<compile_context>
chip_gen: v6e
topology: v6e:2x2x1
jax: 0.10.0
libtpu: 0.0.40
codegen_flags: <defaults>
</compile_context>

<pallas_src>
import numpy as np
import jax
import jax.numpy as jnp
from jax.experimental import pallas as pl
from jax.experimental.pallas import tpu as pltpu


def _round_up(x, m):
    return (x + m - 1) // m * m


def _nbytes(x):
    return int(np.prod(x.shape)) * jnp.dtype(x.dtype).itemsize


def critic_kernel(sa_ref, w1_ref, b1_ref, w2s_ref, w2a_ref, b2_ref,
                  w3_ref, b3_ref, w4_ref, b4_ref, o_ref):
    bf16 = jnp.bfloat16
    f32 = jnp.float32

    sa = sa_ref[...]                     # (TB, SA_pad) bf16, packed state|action

    # fcs1 + ReLU.  Action lanes of w1 are zero rows, so sa @ w1 == state @ W1.
    h = jnp.dot(sa, w1_ref[...], preferred_element_type=f32)
    xs = jnp.maximum(h.astype(bf16) + b1_ref[...], 0)           # bf16 epilogue

    # fc2: cat((xs, action), 1) @ W2 == xs @ W2_state_rows + sa @ W2_action_rows
    h = (jnp.dot(xs, w2s_ref[...], preferred_element_type=f32)
         + jnp.dot(sa, w2a_ref[...], preferred_element_type=f32))
    x = jnp.maximum(h.astype(bf16) + b2_ref[...], 0)

    # fc3 + ReLU
    h = jnp.dot(x, w3_ref[...], preferred_element_type=f32)
    x = jnp.maximum(h.astype(bf16) + b3_ref[...], 0)

    # fc4 head (out_features=1), produced lane-dense: (1,H3) @ (H3,TB) -> (1,TB)
    # (a 1-lane-wide (TB,1) output would be a masked vst + strided writeback).
    q = jnp.dot(w4_ref[...], x.T, preferred_element_type=f32)
    o_ref[...] = q + b4_ref[...]


def critic_forward(state, action, params):
    """state: (B, state_size), action: (B, action_size) -> (B, 1) f32."""
    (w1, b1, w2s, w2a, b2, w3, b3, w4, b4) = params
    B, S = state.shape
    A = action.shape[1]
    SA_pad, H1 = w1.shape
    H2 = w2s.shape[1]
    H3 = w3.shape[1]

    # Batch padded only to a 128 multiple (lane-dense output alignment); the
    # grid uses cdiv so a ragged last tile is clamped by Pallas (rows are
    # independent, tail rows are sliced off below).
    B_pad = _round_up(max(B, 1), 128)
    TB = min(512, B_pad)
    n_tiles = pl.cdiv(B_pad, TB)

    # Pack state|action into one bf16 input (lanes [0,S)=state, [S,S+A)=action).
    sa = jnp.concatenate([state, action], axis=1).astype(jnp.bfloat16)
    sa = jnp.pad(sa, ((0, B_pad - B), (0, SA_pad - (S + A))))

    def const_spec(arr):
        # Constant block index -> weight/bias stays VMEM-resident across steps.
        return pl.BlockSpec(arr.shape, lambda i: (0, 0))

    weights = (w1, b1, w2s, w2a, b2, w3, b3, w4, b4)

    flops = 2 * B_pad * (SA_pad * H1 + H1 * H2 + SA_pad * H2 + H2 * H3 + H3)
    bytes_accessed = (_nbytes(sa) + B_pad * 4
                      + sum(_nbytes(p) for p in weights))
    cost = pl.CostEstimate(flops=flops, transcendentals=0,
                           bytes_accessed=bytes_accessed)

    q_row = pl.pallas_call(
        critic_kernel,
        out_shape=jax.ShapeDtypeStruct((1, B_pad), jnp.float32),
        grid_spec=pltpu.PrefetchScalarGridSpec(
            num_scalar_prefetch=0,
            grid=(n_tiles,),
            in_specs=[
                pl.BlockSpec((TB, SA_pad), lambda i: (i, 0)),   # packed input
                const_spec(w1), const_spec(b1),
                const_spec(w2s), const_spec(w2a), const_spec(b2),
                const_spec(w3), const_spec(b3),
                const_spec(w4), const_spec(b4),
            ],
            out_specs=pl.BlockSpec((1, TB), lambda i: (0, i)),  # lane-dense
        ),
        compiler_params=pltpu.CompilerParams(
            dimension_semantics=("parallel",)),
        cost_estimate=cost,
    )(sa, *weights)

    return q_row[0, :B][:, None]


def init_params(key, state_size, action_size,
                fcs1_units=400, fc2_units=300, fc3_units=150):
    """Init mirroring the PyTorch module's reset_parameters(), then repacked.

    Weights stored (in, out).  PyTorch's hidden_init quirk is kept:
    lim = 1/sqrt(weight.size()[0]) = 1/sqrt(out_features).  Biases use the
    PyTorch default Linear init U(+-1/sqrt(fan_in)).  Layouts:
      * w1  : (SA_pad, H1)  rows [0,S) real, action/pad rows zero
      * w2s : (H1, H2)      state half of fc2
      * w2a : (SA_pad, H2)  rows [S, S+A) hold fc2's action rows, rest zero
    All pads are zero; matmul weights and the hidden biases are bf16; the fc4
    bias stays f32 (added after the f32 head matmul).
    """
    ks = jax.random.split(key, 8)

    def u(k, shape, lim):
        return jax.random.uniform(k, shape, jnp.float32, -lim, lim)

    S, A = state_size, action_size
    SA = S + A
    SA_pad = _round_up(SA, 128)
    H1 = _round_up(fcs1_units, 128)
    H2 = _round_up(fc2_units, 128)
    H3 = _round_up(fc3_units, 128)

    lim1 = 1.0 / np.sqrt(fcs1_units)
    lim2 = 1.0 / np.sqrt(fc2_units)
    lim3 = 1.0 / np.sqrt(fc3_units)

    w1_raw = u(ks[0], (S, fcs1_units), lim1)
    b1_raw = u(ks[1], (1, fcs1_units), 1.0 / np.sqrt(S))
    w2_raw = u(ks[2], (fcs1_units + A, fc2_units), lim2)
    b2_raw = u(ks[3], (1, fc2_units), 1.0 / np.sqrt(fcs1_units + A))
    w3_raw = u(ks[4], (fc2_units, fc3_units), lim3)
    b3_raw = u(ks[5], (1, fc3_units), 1.0 / np.sqrt(fc2_units))
    w4_raw = u(ks[6], (1, fc3_units), 3e-3)
    b4_raw = u(ks[7], (1, 1), 1.0 / np.sqrt(fc3_units))

    bf16 = jnp.bfloat16
    w1 = jnp.zeros((SA_pad, H1), jnp.float32).at[:S, :fcs1_units].set(w1_raw)
    w2s = jnp.zeros((H1, H2), jnp.float32).at[:fcs1_units, :fc2_units].set(
        w2_raw[:fcs1_units])
    w2a = jnp.zeros((SA_pad, H2), jnp.float32).at[S:SA, :fc2_units].set(
        w2_raw[fcs1_units:])
    w3 = jnp.zeros((H2, H3), jnp.float32).at[:fc2_units, :fc3_units].set(w3_raw)
    w4 = jnp.zeros((1, H3), jnp.float32).at[:, :fc3_units].set(w4_raw)
    b1 = jnp.zeros((1, H1), jnp.float32).at[:, :fcs1_units].set(b1_raw)
    b2 = jnp.zeros((1, H2), jnp.float32).at[:, :fc2_units].set(b2_raw)
    b3 = jnp.zeros((1, H3), jnp.float32).at[:, :fc3_units].set(b3_raw)

    return (w1.astype(bf16), b1.astype(bf16),
            w2s.astype(bf16), w2a.astype(bf16), b2.astype(bf16),
            w3.astype(bf16), b3.astype(bf16),
            w4.astype(bf16), b4_raw)


def critic_reference(state, action, params):
    """Plain-JAX reference doing the identical bf16/f32 math."""
    (w1, b1, w2s, w2a, b2, w3, b3, w4, b4) = params
    bf16, f32 = jnp.bfloat16, jnp.float32
    SA_pad = w1.shape[0]
    S, A = state.shape[1], action.shape[1]

    sa = jnp.concatenate([state, action], axis=1).astype(bf16)
    sa = jnp.pad(sa, ((0, 0), (0, SA_pad - (S + A))))

    h = jnp.dot(sa, w1, preferred_element_type=f32)
    xs = jnp.maximum(h.astype(bf16) + b1, 0)
    h = (jnp.dot(xs, w2s, preferred_element_type=f32)
         + jnp.dot(sa, w2a, preferred_element_type=f32))
    x = jnp.maximum(h.astype(bf16) + b2, 0)
    h = jnp.dot(x, w3, preferred_element_type=f32)
    x = jnp.maximum(h.astype(bf16) + b3, 0)
    return jnp.dot(x, w4.T, preferred_element_type=f32) + b4


if __name__ == "__main__":
    state_size = 16
    action_size = 4

    key = jax.random.PRNGKey(0)
    k_params, k_data = jax.random.split(key)
    params = init_params(k_params, state_size, action_size)

    # TODO(synk): use_bn=True path (BatchNorm1d) not implemented; module default is use_bn=False.

    # batch=8   -> single tile, single grid step.
    # batch=640 -> B_pad=640, TB=512, grid=2 with a ragged (clamped) last tile.
    for batch in (8, 640):
        ks, ka = jax.random.split(jax.random.fold_in(k_data, batch))
        state = jax.random.normal(ks, (batch, state_size), jnp.float32)
        action = jax.random.normal(ka, (batch, action_size), jnp.float32)
        q = jax.block_until_ready(critic_forward(state, action, params))
        q_ref = critic_reference(state, action, params)
        assert q.shape == (batch, 1)
        np.testing.assert_allclose(np.asarray(q), np.asarray(q_ref),
                                   rtol=1e-2, atol=1e-2)

    print("KERNEL_OK")
</pallas_src>

<mosaic_0001>
module attributes {stable_mosaic.version = 11 : i64} {
  func.func @critic_kernel(%arg0: i32, %arg1: memref<128x128xbf16, #tpu.memory_space<vmem>>, %arg2: memref<128x512xbf16, #tpu.memory_space<vmem>>, %arg3: memref<1x512xbf16, #tpu.memory_space<vmem>>, %arg4: memref<512x384xbf16, #tpu.memory_space<vmem>>, %arg5: memref<128x384xbf16, #tpu.memory_space<vmem>>, %arg6: memref<1x384xbf16, #tpu.memory_space<vmem>>, %arg7: memref<384x256xbf16, #tpu.memory_space<vmem>>, %arg8: memref<1x256xbf16, #tpu.memory_space<vmem>>, %arg9: memref<1x256xbf16, #tpu.memory_space<vmem>>, %arg10: memref<1x1xf32, #tpu.memory_space<vmem>>, %arg11: memref<1x128xf32, #tpu.memory_space<vmem>>) attributes {dimension_semantics = [#tpu.dimension_semantics<parallel>], iteration_bounds = array<i64: 1>, scalar_prefetch = 0 : i64, scratch_operands = 0 : i64, tpu.core_type = #tpu.core_type<tc>, window_params = [{transform_indices = @transform_0, window_bounds = array<i64: 128, 128>}, {pipeline_mode = #tpu.pipeline_mode<synchronous>, transform_indices = @transform_1, window_bounds = array<i64: 128, 512>}, {pipeline_mode = #tpu.pipeline_mode<synchronous>, transform_indices = @transform_2, window_bounds = array<i64: 1, 512>}, {pipeline_mode = #tpu.pipeline_mode<synchronous>, transform_indices = @transform_3, window_bounds = array<i64: 512, 384>}, {pipeline_mode = #tpu.pipeline_mode<synchronous>, transform_indices = @transform_4, window_bounds = array<i64: 128, 384>}, {pipeline_mode = #tpu.pipeline_mode<synchronous>, transform_indices = @transform_5, window_bounds = array<i64: 1, 384>}, {pipeline_mode = #tpu.pipeline_mode<synchronous>, transform_indices = @transform_6, window_bounds = array<i64: 384, 256>}, {pipeline_mode = #tpu.pipeline_mode<synchronous>, transform_indices = @transform_7, window_bounds = array<i64: 1, 256>}, {pipeline_mode = #tpu.pipeline_mode<synchronous>, transform_indices = @transform_8, window_bounds = array<i64: 1, 256>}, {pipeline_mode = #tpu.pipeline_mode<synchronous>, transform_indices = @transform_9, window_bounds = array<i64: 1, 1>}, {transform_indices = @transform_10, window_bounds = array<i64: 1, 128>}]} {
    %c0 = arith.constant 0 : index
    %c0_0 = arith.constant 0 : index
    %0 = vector.load %arg1[%c0, %c0_0] : memref<128x128xbf16, #tpu.memory_space<vmem>>, vector<128x128xbf16>
    %c0_1 = arith.constant 0 : index
    %c0_2 = arith.constant 0 : index
    %1 = vector.load %arg2[%c0_1, %c0_2] : memref<128x512xbf16, #tpu.memory_space<vmem>>, vector<128x512xbf16>
    %cst = arith.constant dense<0.000000e+00> : vector<128x512xf32>
    %2 = tpu.matmul %0, %1, %cst {dimension_numbers = #tpu.dot_dimension_numbers<[1], [0], [0], [1], [0, 0, 1, 1], [], []>} : vector<128x128xbf16>, vector<128x512xbf16>, vector<128x512xf32> -> vector<128x512xf32>
    %3 = arith.truncf %2 : vector<128x512xf32> to vector<128x512xbf16>
    %c0_3 = arith.constant 0 : index
    %c0_4 = arith.constant 0 : index
    %4 = vector.load %arg3[%c0_3, %c0_4] : memref<1x512xbf16, #tpu.memory_space<vmem>>, vector<1x512xbf16>
    %5 = vector.broadcast %4 : vector<1x512xbf16> to vector<128x512xbf16>
    %6 = arith.addf %3, %5 : vector<128x512xbf16>
    %cst_5 = arith.constant 0.000000e+00 : bf16
    %7 = vector.broadcast %cst_5 : bf16 to vector<128x512xbf16>
    %8 = arith.maximumf %6, %7 : vector<128x512xbf16>
    %c0_6 = arith.constant 0 : index
    %c0_7 = arith.constant 0 : index
    %9 = vector.load %arg4[%c0_6, %c0_7] : memref<512x384xbf16, #tpu.memory_space<vmem>>, vector<512x384xbf16>
    %cst_8 = arith.constant dense<0.000000e+00> : vector<128x384xf32>
    %10 = tpu.matmul %8, %9, %cst_8 {dimension_numbers = #tpu.dot_dimension_numbers<[1], [0], [0], [1], [0, 0, 1, 1], [], []>} : vector<128x512xbf16>, vector<512x384xbf16>, vector<128x384xf32> -> vector<128x384xf32>
    %c0_9 = arith.constant 0 : index
    %c0_10 = arith.constant 0 : index
    %11 = vector.load %arg5[%c0_9, %c0_10] : memref<128x384xbf16, #tpu.memory_space<vmem>>, vector<128x384xbf16>
    %cst_11 = arith.constant dense<0.000000e+00> : vector<128x384xf32>
    %12 = tpu.matmul %0, %11, %cst_11 {dimension_numbers = #tpu.dot_dimension_numbers<[1], [0], [0], [1], [0, 0, 1, 1], [], []>} : vector<128x128xbf16>, vector<128x384xbf16>, vector<128x384xf32> -> vector<128x384xf32>
    %13 = arith.addf %10, %12 : vector<128x384xf32>
    %14 = arith.truncf %13 : vector<128x384xf32> to vector<128x384xbf16>
    %c0_12 = arith.constant 0 : index
    %c0_13 = arith.constant 0 : index
    %15 = vector.load %arg6[%c0_12, %c0_13] : memref<1x384xbf16, #tpu.memory_space<vmem>>, vector<1x384xbf16>
    %16 = vector.broadcast %15 : vector<1x384xbf16> to vector<128x384xbf16>
    %17 = arith.addf %14, %16 : vector<128x384xbf16>
    %cst_14 = arith.constant 0.000000e+00 : bf16
    %18 = vector.broadcast %cst_14 : bf16 to vector<128x384xbf16>
    %19 = arith.maximumf %17, %18 : vector<128x384xbf16>
    %c0_15 = arith.constant 0 : index
    %c0_16 = arith.constant 0 : index
    %20 = vector.load %arg7[%c0_15, %c0_16] : memref<384x256xbf16, #tpu.memory_space<vmem>>, vector<384x256xbf16>
    %cst_17 = arith.constant dense<0.000000e+00> : vector<128x256xf32>
    %21 = tpu.matmul %19, %20, %cst_17 {dimension_numbers = #tpu.dot_dimension_numbers<[1], [0], [0], [1], [0, 0, 1, 1], [], []>} : vector<128x384xbf16>, vector<384x256xbf16>, vector<128x256xf32> -> vector<128x256xf32>
    %22 = arith.truncf %21 : vector<128x256xf32> to vector<128x256xbf16>
    %c0_18 = arith.constant 0 : index
    %c0_19 = arith.constant 0 : index
    %23 = vector.load %arg8[%c0_18, %c0_19] : memref<1x256xbf16, #tpu.memory_space<vmem>>, vector<1x256xbf16>
    %24 = vector.broadcast %23 : vector<1x256xbf16> to vector<128x256xbf16>
    %25 = arith.addf %22, %24 : vector<128x256xbf16>
    %cst_20 = arith.constant 0.000000e+00 : bf16
    %26 = vector.broadcast %cst_20 : bf16 to vector<128x256xbf16>
    %27 = arith.maximumf %25, %26 : vector<128x256xbf16>
    %c0_21 = arith.constant 0 : index
    %c0_22 = arith.constant 0 : index
    %28 = vector.load %arg9[%c0_21, %c0_22] : memref<1x256xbf16, #tpu.memory_space<vmem>>, vector<1x256xbf16>
    %29 = tpu.transpose %27, [1, 0] : vector<128x256xbf16> -> vector<256x128xbf16>
    %cst_23 = arith.constant dense<0.000000e+00> : vector<1x128xf32>
    %30 = tpu.matmul %28, %29, %cst_23 {dimension_numbers = #tpu.dot_dimension_numbers<[1], [0], [0], [1], [0, 0, 1, 1], [], []>} : vector<1x256xbf16>, vector<256x128xbf16>, vector<1x128xf32> -> vector<1x128xf32>
    %c0_24 = arith.constant 0 : index
    %c0_25 = arith.constant 0 : index
    %31 = vector.load %arg10[%c0_24, %c0_25] : memref<1x1xf32, #tpu.memory_space<vmem>>, vector<1x1xf32>
    %32 = vector.broadcast %31 : vector<1x1xf32> to vector<1x128xf32>
    %33 = arith.addf %30, %32 : vector<1x128xf32>
    %c0_26 = arith.constant 0 : index
    %c0_27 = arith.constant 0 : index
    %34 = vector.load %arg11[%c0_26, %c0_27] : memref<1x128xf32, #tpu.memory_space<vmem>>, vector<1x128xf32>
    tpu.vector_store %arg11[%c0_26, %c0_27], %33 {strides = array<i32>} : memref<1x128xf32, #tpu.memory_space<vmem>>, vector<1x128xf32>,
    return
  }
  func.func @transform_0(%arg0: i32) -> (i32, i32) {
    %c0_i32 = arith.constant 0 : i32
    %c0_i32_0 = arith.constant 0 : i32
    return %arg0, %c0_i32 : i32, i32
  }
  func.func @transform_1(%arg0: i32) -> (i32, i32) {
    %c0_i32 = arith.constant 0 : i32
    %c0_i32_0 = arith.constant 0 : i32
    %c0_i32_1 = arith.constant 0 : i32
    return %c0_i32, %c0_i32_0 : i32, i32
  }
  func.func @transform_2(%arg0: i32) -> (i32, i32) {
    %c0_i32 = arith.constant 0 : i32
    %c0_i32_0 = arith.constant 0 : i32
    %c0_i32_1 = arith.constant 0 : i32
    return %c0_i32, %c0_i32_0 : i32, i32
  }
  func.func @transform_3(%arg0: i32) -> (i32, i32) {
    %c0_i32 = arith.constant 0 : i32
    %c0_i32_0 = arith.constant 0 : i32
    %c0_i32_1 = arith.constant 0 : i32
    return %c0_i32, %c0_i32_0 : i32, i32
  }
  func.func @transform_4(%arg0: i32) -> (i32, i32) {
    %c0_i32 = arith.constant 0 : i32
    %c0_i32_0 = arith.constant 0 : i32
    %c0_i32_1 = arith.constant 0 : i32
    return %c0_i32, %c0_i32_0 : i32, i32
  }
  func.func @transform_5(%arg0: i32) -> (i32, i32) {
    %c0_i32 = arith.constant 0 : i32
    %c0_i32_0 = arith.constant 0 : i32
    %c0_i32_1 = arith.constant 0 : i32
    return %c0_i32, %c0_i32_0 : i32, i32
  }
  func.func @transform_6(%arg0: i32) -> (i32, i32) {
    %c0_i32 = arith.constant 0 : i32
    %c0_i32_0 = arith.constant 0 : i32
    %c0_i32_1 = arith.constant 0 : i32
    return %c0_i32, %c0_i32_0 : i32, i32
  }
  func.func @transform_7(%arg0: i32) -> (i32, i32) {
    %c0_i32 = arith.constant 0 : i32
    %c0_i32_0 = arith.constant 0 : i32
    %c0_i32_1 = arith.constant 0 : i32
    return %c0_i32, %c0_i32_0 : i32, i32
  }
  func.func @transform_8(%arg0: i32) -> (i32, i32) {
    %c0_i32 = arith.constant 0 : i32
    %c0_i32_0 = arith.constant 0 : i32
    %c0_i32_1 = arith.constant 0 : i32
    return %c0_i32, %c0_i32_0 : i32, i32
  }
  func.func @transform_9(%arg0: i32) -> (i32, i32) {
    %c0_i32 = arith.constant 0 : i32
    %c0_i32_0 = arith.constant 0 : i32
    %c0_i32_1 = arith.constant 0 : i32
    return %c0_i32, %c0_i32_0 : i32, i32
  }
  func.func @transform_10(%arg0: i32) -> (i32, i32) {
    %c0_i32 = arith.constant 0 : i32
    %c0_i32_0 = arith.constant 0 : i32
    return %c0_i32, %arg0 : i32, i32
  }
}

</mosaic_0001>

<llo_original>
// kernel: tpu_custom_call.1
$region0: #{tpu_custom_call.1}
  #allocation0 [shape = 'u32[]', space=smem, size = 0x4, offset = 0x4, fixed_abs, tag = 'smem constant byte address 0x4 - core index']
  #allocation1 [shape = 'u32[144,128]{1,0:T(1,128)}', space=vmem, size = 0x12000, scoped, tag = 'internal scratch']
  #allocation2 [shape = 'f32[1,1]{1,0:T(1,128)S(1)}', space=vmem, size = 0x200, scoped, tag = 'scoped memory for tpu_custom_call.1']
  %s0 = inlined_call_operand.hbm [shape: bf16[128,128], index: 0, kind: input, shape index: {}]
  %s1 = inlined_call_operand.hbm [shape: bf16[128,512], index: 1, kind: input, shape index: {}]
  %s2 = inlined_call_operand.vmem [shape: bf16[1,512], index: 2, kind: input, shape index: {}]
  %s3 = inlined_call_operand.hbm [shape: bf16[512,384], index: 3, kind: input, shape index: {}]
  %s4 = inlined_call_operand.hbm [shape: bf16[128,384], index: 4, kind: input, shape index: {}]
  %s5 = inlined_call_operand.vmem [shape: bf16[1,384], index: 5, kind: input, shape index: {}]
  %s6 = inlined_call_operand.hbm [shape: bf16[384,256], index: 6, kind: input, shape index: {}]
  %s7 = inlined_call_operand.vmem [shape: bf16[1,256], index: 7, kind: input, shape index: {}]
  %s8 = inlined_call_operand.vmem [shape: bf16[1,256], index: 8, kind: input, shape index: {}]
  %s9 = inlined_call_operand.<no memory space> [shape: f32[1,1], index: 9, kind: input, shape index: {}]
  %s10 = inlined_call_operand.hbm [shape: f32[1,128], index: 10, kind: output, shape index: {}]
  %s11 = sld [smem:[#allocation0]]
  $region70: #{tpu_custom_call.1} parent=0
    _
  %s13 = ssub.s32 1, %s11
  %s14 = scalar_select 0, %s13, %s11
  %v15 = vstv %s9
  %16 = vst [vmem:[#allocation2] sm:$0x1] %v15
  $region1: #{tpu_custom_call.1} parent=0
    #allocation3 [shape = 'u8[32768]{0}', space=vmem, size = 0x8000, scoped, tag = 'input window, operand 0, single buffered']
    #allocation4 [shape = 's32[1]{0}', space=sflag, size = 0x4, scoped, tag = 'scoped memory for tpu_custom_call.1']
    #allocation5 [shape = 's32[1]{0}', space=sflag, size = 0x4, scoped, tag = 'scoped memory for tpu_custom_call.1']
    #allocation6 [shape = 'u8[131072]{0}', space=vmem, size = 0x20000, scoped, tag = 'input window, operand 1, single buffered']
    #allocation7 [shape = 's32[1]{0}', space=sflag, size = 0x4, scoped, tag = 'scoped memory for tpu_custom_call.1']
    #allocation8 [shape = 'u8[393216]{0}', space=vmem, size = 0x60000, scoped, tag = 'input window, operand 3, single buffered']
    #allocation9 [shape = 'u8[98304]{0}', space=vmem, size = 0x18000, scoped, tag = 'input window, operand 4, single buffered']
    #allocation10 [shape = 's32[1]{0}', space=sflag, size = 0x4, scoped, tag = 'scoped memory for tpu_custom_call.1']
    #allocation11 [shape = 'u8[196608]{0}', space=vmem, size = 0x30000, scoped, tag = 'input window, operand 6, single buffered']
    #allocation12 [shape = 'u8[512]{0}', space=vmem, size = 0x400, scoped, tag = 'output window, operand 0, single buffered']
    %17 = vsyncpa [#allocation4], 0
    %18 = vsyncpa [#allocation7], 0
    %19 = vsyncpa [#allocation10], 0
    %20 = vsyncpa [#allocation5], 0
    // Predicated region
    $region2: #{tpu_custom_call.1} parent=1 // pred_check
      _
    $region3: #{tpu_custom_call.1} parent=1 // pred_check_branch
      %22 = sbr.rel (0) target = $region5
    $region4: #{tpu_custom_call.1} parent=1 // pred_region
      %s24 = ssub.s32 1024, 1024
      %25 = vsyncadd [#allocation4], %s24
      %s26 = sshll.u32 [#allocation3], 4
      %s27 = int_to_ptr.vmem [resolvable:$true] %s26
      %32 = dma.hbm_to_vmem [thread:$0]  %s0, 1024, %s27, [#allocation4], 64, 64, 4
    $region5: #{tpu_custom_call.1} parent=1 // pred_fallthru
      _
    // Predicated region
    $region6: #{tpu_custom_call.1} parent=1 // pred_check
      _
    $region7: #{tpu_custom_call.1} parent=1 // pred_check_branch
      %34 = sbr.rel (0) target = $region9
    $region8: #{tpu_custom_call.1} parent=1 // pred_region
      %s36 = ssub.s32 4096, 4096
      %37 = vsyncadd [#allocation7], %s36
      %s38 = sshll.u32 [#allocation6], 4
      %s39 = int_to_ptr.vmem [resolvable:$true] %s38
      %44 = dma.hbm_to_vmem [thread:$0]  %s1, 4096, %s39, [#allocation7], 256, 256, 16
    $region9: #{tpu_custom_call.1} parent=1 // pred_fallthru
      _
    // Predicated region
    $region10: #{tpu_custom_call.1} parent=1 // pred_check
      _
    $region11: #{tpu_custom_call.1} parent=1 // pred_check_branch
      %46 = sbr.rel (0) target = $region13
    $region12: #{tpu_custom_call.1} parent=1 // pred_region
      _
    $region13: #{tpu_custom_call.1} parent=1 // pred_fallthru
      _
    // Predicated region
    $region14: #{tpu_custom_call.1} parent=1 // pred_check
      _
    $region15: #{tpu_custom_call.1} parent=1 // pred_check_branch
      %48 = sbr.rel (0) target = $region17
    $region16: #{tpu_custom_call.1} parent=1 // pred_region
      %s50 = ssub.s32 12288, 12288
      %51 = vsyncadd [#allocation7], %s50
      %s52 = sshll.u32 [#allocation8], 4
      %s53 = int_to_ptr.vmem [resolvable:$true] %s52
      %58 = dma.hbm_to_vmem [thread:$0]  %s3, 12288, %s53, [#allocation7], 192, 192, 12
    $region17: #{tpu_custom_call.1} parent=1 // pred_fallthru
      _
    // Predicated region
    $region18: #{tpu_custom_call.1} parent=1 // pred_check
      _
    $region19: #{tpu_custom_call.1} parent=1 // pred_check_branch
      %60 = sbr.rel (0) target = $region21
    $region20: #{tpu_custom_call.1} parent=1 // pred_region
      %s62 = ssub.s32 3072, 3072
      %63 = vsyncadd [#allocation10], %s62
      %s64 = sshll.u32 [#allocation9], 4
      %s65 = int_to_ptr.vmem [resolvable:$true] %s64
      %70 = dma.hbm_to_vmem [thread:$0]  %s4, 3072, %s65, [#allocation10], 192, 192, 12
    $region21: #{tpu_custom_call.1} parent=1 // pred_fallthru
      _
    // Predicated region
    $region22: #{tpu_custom_call.1} parent=1 // pred_check
      _
    $region23: #{tpu_custom_call.1} parent=1 // pred_check_branch
      %72 = sbr.rel (0) target = $region25
    $region24: #{tpu_custom_call.1} parent=1 // pred_region
      _
    $region25: #{tpu_custom_call.1} parent=1 // pred_fallthru
      _
    // Predicated region
    $region26: #{tpu_custom_call.1} parent=1 // pred_check
      _
    $region27: #{tpu_custom_call.1} parent=1 // pred_check_branch
      %74 = sbr.rel (0) target = $region29
    $region28: #{tpu_custom_call.1} parent=1 // pred_region
      %s76 = ssub.s32 6144, 6144
      %77 = vsyncadd [#allocation10], %s76
      %s78 = sshll.u32 [#allocation11], 4
      %s79 = int_to_ptr.vmem [resolvable:$true] %s78
      %84 = dma.hbm_to_vmem [thread:$0]  %s6, 6144, %s79, [#allocation10], 128, 128, 8
    $region29: #{tpu_custom_call.1} parent=1 // pred_fallthru
      _
    // Predicated region
    $region30: #{tpu_custom_call.1} parent=1 // pred_check
      _
    $region31: #{tpu_custom_call.1} parent=1 // pred_check_branch
      %86 = sbr.rel (0) target = $region33
    $region32: #{tpu_custom_call.1} parent=1 // pred_region
      _
    $region33: #{tpu_custom_call.1} parent=1 // pred_fallthru
      _
    // Predicated region
    $region34: #{tpu_custom_call.1} parent=1 // pred_check
      _
    $region35: #{tpu_custom_call.1} parent=1 // pred_check_branch
      %88 = sbr.rel (0) target = $region37
    $region36: #{tpu_custom_call.1} parent=1 // pred_region
      _
    $region37: #{tpu_custom_call.1} parent=1 // pred_fallthru
      _
    // Predicated region
    $region38: #{tpu_custom_call.1} parent=1 // pred_check
      _
    $region39: #{tpu_custom_call.1} parent=1 // pred_check_branch
      %90 = sbr.rel (0) target = $region41
    $region40: #{tpu_custom_call.1} parent=1 // pred_region
      _
    $region41: #{tpu_custom_call.1} parent=1 // pred_fallthru
      _
    // Predicated region
    $region42: #{tpu_custom_call.1} parent=1 // pred_check
      _
    $region43: #{tpu_custom_call.1} parent=1 // pred_check_branch
      %92 = sbr.rel (0) target = $region45
    $region44: #{tpu_custom_call.1} parent=1 // pred_region
      %93 = dma.done [#allocation4], 1024
    $region45: #{tpu_custom_call.1} parent=1 // pred_fallthru
      _
    // Predicated region
    $region46: #{tpu_custom_call.1} parent=1 // pred_check
      _
    $region47: #{tpu_custom_call.1} parent=1 // pred_check_branch
      %95 = sbr.rel (0) target = $region49
    $region48: #{tpu_custom_call.1} parent=1 // pred_region
      %96 = dma.done [#allocation7], 4096
    $region49: #{tpu_custom_call.1} parent=1 // pred_fallthru
      _
    // Predicated region
    $region50: #{tpu_custom_call.1} parent=1 // pred_check
      _
    $region51: #{tpu_custom_call.1} parent=1 // pred_check_branch
      %98 = sbr.rel (0) target = $region53
    $region52: #{tpu_custom_call.1} parent=1 // pred_region
      %99 = dma.done [#allocation7], 12288
    $region53: #{tpu_custom_call.1} parent=1 // pred_fallthru
      _
    // Predicated region
    $region54: #{tpu_custom_call.1} parent=1 // pred_check
      _
    $region55: #{tpu_custom_call.1} parent=1 // pred_check_branch
      %101 = sbr.rel (0) target = $region57
    $region56: #{tpu_custom_call.1} parent=1 // pred_region
      %102 = dma.done [#allocation10], 3072
    $region57: #{tpu_custom_call.1} parent=1 // pred_fallthru
      _
    // Predicated region
    $region58: #{tpu_custom_call.1} parent=1 // pred_check
      _
    $region59: #{tpu_custom_call.1} parent=1 // pred_check_branch
      %104 = sbr.rel (0) target = $region61
    $region60: #{tpu_custom_call.1} parent=1 // pred_region
      %105 = dma.done [#allocation10], 6144
    $region61: #{tpu_custom_call.1} parent=1 // pred_fallthru
      _
    %v107 = vld [vmem:[#allocation3] sm:$0xf]
    %v108 = vld [vmem:[#allocation3 + $0x4] sm:$0xf]
    %v109 = vld [vmem:[#allocation3 + $0x8] sm:$0xf]
    %v110 = vld [vmem:[#allocation3 + $0xc] sm:$0xf]
    %v111 = vld [vmem:[#allocation3 + $0x10] sm:$0xf]
    %v112 = vld [vmem:[#allocation3 + $0x14] sm:$0xf]
    %v113 = vld [vmem:[#allocation3 + $0x18] sm:$0xf]
    %v114 = vld [vmem:[#allocation3 + $0x1c] sm:$0xf]
    %v115 = vld [vmem:[#allocation3 + $0x20] sm:$0xf]
    %v116 = vld [vmem:[#allocation3 + $0x24] sm:$0xf]
    %v117 = vld [vmem:[#allocation3 + $0x28] sm:$0xf]
    %v118 = vld [vmem:[#allocation3 + $0x2c] sm:$0xf]
    %v119 = vld [vmem:[#allocation3 + $0x30] sm:$0xf]
    %v120 = vld [vmem:[#allocation3 + $0x34] sm:$0xf]
    %v121 = vld [vmem:[#allocation3 + $0x38] sm:$0xf]
    %v122 = vld [vmem:[#allocation3 + $0x3c] sm:$0xf]
    %v123 = vld [vmem:[#allocation6] sm:$0xff]
    %v124 = vld [vmem:[#allocation6 + $0x8] sm:$0xff]
    %v125 = vld [vmem:[#allocation6 + $0x10] sm:$0xff]
    %v126 = vld [vmem:[#allocation6 + $0x18] sm:$0xff]
    %v127 = vld [vmem:[#allocation6 + $0x20] sm:$0xff]
    %v128 = vld [vmem:[#allocation6 + $0x28] sm:$0xff]
    %v129 = vld [vmem:[#allocation6 + $0x30] sm:$0xff]
    %v130 = vld [vmem:[#allocation6 + $0x38] sm:$0xff]
    %v131 = vld [vmem:[#allocation6 + $0x40] sm:$0xff]
    %v132 = vld [vmem:[#allocation6 + $0x48] sm:$0xff]
    %v133 = vld [vmem:[#allocation6 + $0x50] sm:$0xff]
    %v134 = vld [vmem:[#allocation6 + $0x58] sm:$0xff]
    %v135 = vld [vmem:[#allocation6 + $0x60] sm:$0xff]
    %v136 = vld [vmem:[#allocation6 + $0x68] sm:$0xff]
    %v137 = vld [vmem:[#allocation6 + $0x70] sm:$0xff]
    %v138 = vld [vmem:[#allocation6 + $0x78] sm:$0xff]
    %v139 = vld [vmem:[#allocation6 + $0x80] sm:$0xff]
    %v140 = vld [vmem:[#allocation6 + $0x88] sm:$0xff]
    %v141 = vld [vmem:[#allocation6 + $0x90] sm:$0xff]
    %v142 = vld [vmem:[#allocation6 + $0x98] sm:$0xff]
    %v143 = vld [vmem:[#allocation6 + $0xa0] sm:$0xff]
    %v144 = vld [vmem:[#allocation6 + $0xa8] sm:$0xff]
    %v145 = vld [vmem:[#allocation6 + $0xb0] sm:$0xff]
    %v146 = vld [vmem:[#allocation6 + $0xb8] sm:$0xff]
    %v147 = vld [vmem:[#allocation6 + $0xc0] sm:$0xff]
    %v148 = vld [vmem:[#allocation6 + $0xc8] sm:$0xff]
    %v149 = vld [vmem:[#allocation6 + $0xd0] sm:$0xff]
    %v150 = vld [vmem:[#allocation6 + $0xd8] sm:$0xff]
    %v151 = vld [vmem:[#allocation6 + $0xe0] sm:$0xff]
    %v152 = vld [vmem:[#allocation6 + $0xe8] sm:$0xff]
    %v153 = vld [vmem:[#allocation6 + $0xf0] sm:$0xff]
    %v154 = vld [vmem:[#allocation6 + $0xf8] sm:$0xff]
    %v171 = vunpack.c.l.b16 %v107
    %v172 = vunpack.c.l.b16 %v108
    %v173 = vunpack.c.l.b16 %v109
    %v174 = vunpack.c.l.b16 %v110
    %v175 = vunpack.c.l.b16 %v111
    %v176 = vunpack.c.l.b16 %v112
    %v177 = vunpack.c.l.b16 %v113
    %v178 = vunpack.c.l.b16 %v114
    %v179 = vunpack.c.l.b16 %v115
    %v180 = vunpack.c.l.b16 %v116
    %v181 = vunpack.c.l.b16 %v117
    %v182 = vunpack.c.l.b16 %v118
    %v183 = vunpack.c.l.b16 %v119
    %v184 = vunpack.c.l.b16 %v120
    %v185 = vunpack.c.l.b16 %v121
    %v186 = vunpack.c.l.b16 %v122
    %v187 = vpack.c.b16 %v172, %v171
    %v188 = vpack.c.b16 %v174, %v173
    %v189 = vpack.c.b16 %v176, %v175
    %v190 = vpack.c.b16 %v178, %v177
    %v191 = vpack.c.b16 %v180, %v179
    %v192 = vpack.c.b16 %v182, %v181
    %v193 = vpack.c.b16 %v184, %v183
    %v194 = vpack.c.b16 %v186, %v185
    %v235 = vunpack.c.l.b16 %v123
    %v236 = vunpack.c.h.b16 %v123
    %v237 = vunpack.c.l.b16 %v124
    %v238 = vunpack.c.h.b16 %v124
    %v239 = vunpack.c.l.b16 %v125
    %v240 = vunpack.c.h.b16 %v125
    %v241 = vunpack.c.l.b16 %v126
    %v242 = vunpack.c.h.b16 %v126
    %v243 = vunpack.c.l.b16 %v127
    %v244 = vunpack.c.h.b16 %v127
    %v245 = vunpack.c.l.b16 %v128
    %v246 = vunpack.c.h.b16 %v128
    %v247 = vunpack.c.l.b16 %v129
    %v248 = vunpack.c.h.b16 %v129
    %v249 = vunpack.c.l.b16 %v130
    %v250 = vunpack.c.h.b16 %v130
    %v251 = vunpack.c.l.b16 %v131
    %v252 = vunpack.c.h.b16 %v131
    %v253 = vunpack.c.l.b16 %v132
    %v254 = vunpack.c.h.b16 %v132
    %v255 = vunpack.c.l.b16 %v133
    %v256 = vunpack.c.h.b16 %v133
    %v257 = vunpack.c.l.b16 %v134
    %v258 = vunpack.c.h.b16 %v134
    %v259 = vunpack.c.l.b16 %v135
    %v260 = vunpack.c.h.b16 %v135
    %v261 = vunpack.c.l.b16 %v136
    %v262 = vunpack.c.h.b16 %v136
    %v263 = vunpack.c.l.b16 %v137
    %v264 = vunpack.c.h.b16 %v137
    %v265 = vunpack.c.l.b16 %v138
    %v266 = vunpack.c.h.b16 %v138
    %v267 = vunpack.c.l.b16 %v139
    %v268 = vunpack.c.h.b16 %v139
    %v269 = vunpack.c.l.b16 %v140
    %v270 = vunpack.c.h.b16 %v140
    %v271 = vunpack.c.l.b16 %v141
    %v272 = vunpack.c.h.b16 %v141
    %v273 = vunpack.c.l.b16 %v142
    %v274 = vunpack.c.h.b16 %v142
    %v275 = vunpack.c.l.b16 %v143
    %v276 = vunpack.c.h.b16 %v143
    %v277 = vunpack.c.l.b16 %v144
    %v278 = vunpack.c.h.b16 %v144
    %v279 = vunpack.c.l.b16 %v145
    %v280 = vunpack.c.h.b16 %v145
    %v281 = vunpack.c.l.b16 %v146
    %v282 = vunpack.c.h.b16 %v146
    %v283 = vunpack.c.l.b16 %v147
    %v284 = vunpack.c.h.b16 %v147
    %v285 = vunpack.c.l.b16 %v148
    %v286 = vunpack.c.h.b16 %v148
    %v287 = vunpack.c.l.b16 %v149
    %v288 = vunpack.c.h.b16 %v149
    %v289 = vunpack.c.l.b16 %v150
    %v290 = vunpack.c.h.b16 %v150
    %v291 = vunpack.c.l.b16 %v151
    %v292 = vunpack.c.h.b16 %v151
    %v293 = vunpack.c.l.b16 %v152
    %v294 = vunpack.c.h.b16 %v152
    %v295 = vunpack.c.l.b16 %v153
    %v296 = vunpack.c.h.b16 %v153
    %v297 = vunpack.c.l.b16 %v154
    %v298 = vunpack.c.h.b16 %v154
    %v299 = vpack.c.b16 %v239, %v235
    %v300 = vpack.c.b16 %v240, %v236
    %v301 = vpack.c.b16 %v241, %v237
    %v302 = vpack.c.b16 %v242, %v238
    %v303 = vpack.c.b16 %v247, %v243
    %v304 = vpack.c.b16 %v248, %v244
    %v305 = vpack.c.b16 %v249, %v245
    %v306 = vpack.c.b16 %v250, %v246
    %v307 = vpack.c.b16 %v255, %v251
    %v308 = vpack.c.b16 %v256, %v252
    %v309 = vpack.c.b16 %v257, %v253
    %v310 = vpack.c.b16 %v258, %v254
    %v311 = vpack.c.b16 %v263, %v259
    %v312 = vpack.c.b16 %v264, %v260
    %v313 = vpack.c.b16 %v265, %v261
    %v314 = vpack.c.b16 %v266, %v262
    %v315 = vpack.c.b16 %v271, %v267
    %v316 = vpack.c.b16 %v272, %v268
    %v317 = vpack.c.b16 %v273, %v269
    %v318 = vpack.c.b16 %v274, %v270
    %v319 = vpack.c.b16 %v279, %v275
    %v320 = vpack.c.b16 %v280, %v276
    %v321 = vpack.c.b16 %v281, %v277
    %v322 = vpack.c.b16 %v282, %v278
    %v323 = vpack.c.b16 %v287, %v283
    %v324 = vpack.c.b16 %v288, %v284
    %v325 = vpack.c.b16 %v289, %v285
    %v326 = vpack.c.b16 %v290, %v286
    %v327 = vpack.c.b16 %v295, %v291
    %v328 = vpack.c.b16 %v296, %v292
    %v329 = vpack.c.b16 %v297, %v293
    %v330 = vpack.c.b16 %v298, %v294
    %363 = vmatprep.subr.bf16.mxu0 %v328
    %364 = vmatpush1.bf16.msra.mxu0 %v327
    %365 = vmatprep.subr.bf16.mxu0 %v324
    %366 = vmatpush1.bf16.msra.mxu0 %v323
    %367 = vmatprep.subr.bf16.mxu0 %v320
    %368 = vmatpush1.bf16.msra.mxu0 %v319
    %369 = vmatprep.subr.bf16.mxu0 %v316
    %370 = vmatpush1.bf16.msra.mxu0 %v315
    %371 = vmatprep.subr.bf16.mxu0 %v312
    %372 = vmatpush1.bf16.msra.mxu0 %v311
    %373 = vmatprep.subr.bf16.mxu0 %v308
    %374 = vmatpush1.bf16.msra.mxu0 %v307
    %375 = vmatprep.subr.bf16.mxu0 %v304
    %376 = vmatpush1.bf16.msra.mxu0 %v303
    %377 = vmatprep.subr.bf16.mxu0 %v300
    %378 = vmatpush1.bf16.msra.mxu0 %v299
    %379 = vmatprep.subr.bf16.mxu0 0
    %380 = vmatpush2.bf16.msra.mxu0 0
    %381 = vmatprep.subr.bf16.mxu0 0
    %382 = vmatpush2.bf16.msra.mxu0 0
    %383 = vmatprep.subr.bf16.mxu0 0
    %384 = vmatpush2.bf16.msra.mxu0 0
    %385 = vmatprep.subr.bf16.mxu0 0
    %386 = vmatpush2.bf16.msra.mxu0 0
    %387 = vmatprep.subr.bf16.mxu0 0
    %388 = vmatpush2.bf16.msra.mxu0 0
    %389 = vmatprep.subr.bf16.mxu0 0
    %390 = vmatpush2.bf16.msra.mxu0 0
    %391 = vmatprep.subr.bf16.mxu0 0
    %392 = vmatpush2.bf16.msra.mxu0 0
    %393 = vmatprep.subr.bf16.mxu0 0
    %394 = vmatpush2.bf16.msra.mxu0 0
    %395 = vmatprep.mubr.bf16.mxu0 0
    %396 = vmatmul.mubr.bf16.gmra.mxu0 %v187
    %v397 = vpop.f32.mrf.mxu0
    %v398 = vadd.f32 0.0, %v397
    %v399 = vpop.f32.mrf.mxu0
    %v400 = vadd.f32 0.0, %v399
    %v401 = vpop.f32.mrf.mxu0
    %v402 = vadd.f32 0.0, %v401
    %v403 = vpop.f32.mrf.mxu0
    %v404 = vadd.f32 0.0, %v403
    %405 = vmatprep.mubr.bf16.mxu0 0
    %406 = vmatmul.mubr.bf16.gmra.mxu0 %v188
    %v407 = vpop.f32.mrf.mxu0
    %v408 = vadd.f32 0.0, %v407
    %v409 = vpop.f32.mrf.mxu0
    %v410 = vadd.f32 0.0, %v409
    %v411 = vpop.f32.mrf.mxu0
    %v412 = vadd.f32 0.0, %v411
    %v413 = vpop.f32.mrf.mxu0
    %v414 = vadd.f32 0.0, %v413
    %415 = vmatprep.mubr.bf16.mxu0 0
    %416 = vmatmul.mubr.bf16.gmra.mxu0 %v189
    %v417 = vpop.f32.mrf.mxu0
    %v418 = vadd.f32 0.0, %v417
    %v419 = vpop.f32.mrf.mxu0
    %v420 = vadd.f32 0.0, %v419
    %v421 = vpop.f32.mrf.mxu0
    %v422 = vadd.f32 0.0, %v421
    %v423 = vpop.f32.mrf.mxu0
    %v424 = vadd.f32 0.0, %v423
    %425 = vmatprep.mubr.bf16.mxu0 0
    %426 = vmatmul.mubr.bf16.gmra.mxu0 %v190
    %v427 = vpop.f32.mrf.mxu0
    %v428 = vadd.f32 0.0, %v427
    %v429 = vpop.f32.mrf.mxu0
    %v430 = vadd.f32 0.0, %v429
    %v431 = vpop.f32.mrf.mxu0
    %v432 = vadd.f32 0.0, %v431
    %v433 = vpop.f32.mrf.mxu0
    %v434 = vadd.f32 0.0, %v433
    %435 = vmatprep.mubr.bf16.mxu0 0
    %436 = vmatmul.mubr.bf16.gmra.mxu0 %v191
    %v437 = vpop.f32.mrf.mxu0
    %v438 = vadd.f32 0.0, %v437
    %v439 = vpop.f32.mrf.mxu0
    %v440 = vadd.f32 0.0, %v439
    %v441 = vpop.f32.mrf.mxu0
    %v442 = vadd.f32 0.0, %v441
    %v443 = vpop.f32.mrf.mxu0
    %v444 = vadd.f32 0.0, %v443
    %445 = vmatprep.mubr.bf16.mxu0 0
    %446 = vmatmul.mubr.bf16.gmra.mxu0 %v192
    %v447 = vpop.f32.mrf.mxu0
    %v448 = vadd.f32 0.0, %v447
    %v449 = vpop.f32.mrf.mxu0
    %v450 = vadd.f32 0.0, %v449
    %v451 = vpop.f32.mrf.mxu0
    %v452 = vadd.f32 0.0, %v451
    %v453 = vpop.f32.mrf.mxu0
    %v454 = vadd.f32 0.0, %v453
    %455 = vmatprep.mubr.bf16.mxu0 0
    %456 = vmatmul.mubr.bf16.gmra.mxu0 %v193
    %v457 = vpop.f32.mrf.mxu0
    %v458 = vadd.f32 0.0, %v457
    %v459 = vpop.f32.mrf.mxu0
    %v460 = vadd.f32 0.0, %v459
    %v461 = vpop.f32.mrf.mxu0
    %v462 = vadd.f32 0.0, %v461
    %v463 = vpop.f32.mrf.mxu0
    %v464 = vadd.f32 0.0, %v463
    %465 = vmatprep.mubr.bf16.mxu0 0
    %466 = vmatmul.mubr.bf16.gmra.mxu0 %v194
    %v467 = vpop.f32.mrf.mxu0
    %v468 = vadd.f32 0.0, %v467
    %v469 = vpop.f32.mrf.mxu0
    %v470 = vadd.f32 0.0, %v469
    %v471 = vpop.f32.mrf.mxu0
    %v472 = vadd.f32 0.0, %v471
    %v473 = vpop.f32.mrf.mxu0
    %v474 = vadd.f32 0.0, %v473
    %475 = vdwg.mxu0
    %476 = vmatprep.subr.bf16.mxu0 %v330
    %477 = vmatpush1.bf16.msra.mxu0 %v329
    %478 = vmatprep.subr.bf16.mxu0 %v326
    %479 = vmatpush1.bf16.msra.mxu0 %v325
    %480 = vmatprep.subr.bf16.mxu0 %v322
    %481 = vmatpush1.bf16.msra.mxu0 %v321
    %482 = vmatprep.subr.bf16.mxu0 %v318
    %483 = vmatpush1.bf16.msra.mxu0 %v317
    %484 = vmatprep.subr.bf16.mxu0 %v314
    %485 = vmatpush1.bf16.msra.mxu0 %v313
    %486 = vmatprep.subr.bf16.mxu0 %v310
    %487 = vmatpush1.bf16.msra.mxu0 %v309
    %488 = vmatprep.subr.bf16.mxu0 %v306
    %489 = vmatpush1.bf16.msra.mxu0 %v305
    %490 = vmatprep.subr.bf16.mxu0 %v302
    %491 = vmatpush1.bf16.msra.mxu0 %v301
    %492 = vmatprep.subr.bf16.mxu0 0
    %493 = vmatpush2.bf16.msra.mxu0 0
    %494 = vmatprep.subr.bf16.mxu0 0
    %495 = vmatpush2.bf16.msra.mxu0 0
    %496 = vmatprep.subr.bf16.mxu0 0
    %497 = vmatpush2.bf16.msra.mxu0 0
    %498 = vmatprep.subr.bf16.mxu0 0
    %499 = vmatpush2.bf16.msra.mxu0 0
    %500 = vmatprep.subr.bf16.mxu0 0
    %501 = vmatpush2.bf16.msra.mxu0 0
    %502 = vmatprep.subr.bf16.mxu0 0
    %503 = vmatpush2.bf16.msra.mxu0 0
    %504 = vmatprep.subr.bf16.mxu0 0
    %505 = vmatpush2.bf16.msra.mxu0 0
    %506 = vmatprep.subr.bf16.mxu0 0
    %507 = vmatpush2.bf16.msra.mxu0 0
    %508 = vmatprep.mubr.bf16.mxu0 0
    %509 = vmatmul.mubr.bf16.gmra.mxu0 %v187
    %v510 = vpop.f32.mrf.mxu0
    %v511 = vadd.f32 0.0, %v510
    %v512 = vpop.f32.mrf.mxu0
    %v513 = vadd.f32 0.0, %v512
    %v514 = vpop.f32.mrf.mxu0
    %v515 = vadd.f32 0.0, %v514
    %v516 = vpop.f32.mrf.mxu0
    %v517 = vadd.f32 0.0, %v516
    %518 = vmatprep.mubr.bf16.mxu0 0
    %519 = vmatmul.mubr.bf16.gmra.mxu0 %v188
    %v520 = vpop.f32.mrf.mxu0
    %v521 = vadd.f32 0.0, %v520
    %v522 = vpop.f32.mrf.mxu0
    %v523 = vadd.f32 0.0, %v522
    %v524 = vpop.f32.mrf.mxu0
    %v525 = vadd.f32 0.0, %v524
    %v526 = vpop.f32.mrf.mxu0
    %v527 = vadd.f32 0.0, %v526
    %528 = vmatprep.mubr.bf16.mxu0 0
    %529 = vmatmul.mubr.bf16.gmra.mxu0 %v189
    %v530 = vpop.f32.mrf.mxu0
    %v531 = vadd.f32 0.0, %v530
    %v532 = vpop.f32.mrf.mxu0
    %v533 = vadd.f32 0.0, %v532
    %v534 = vpop.f32.mrf.mxu0
    %v535 = vadd.f32 0.0, %v534
    %v536 = vpop.f32.mrf.mxu0
    %v537 = vadd.f32 0.0, %v536
    %538 = vmatprep.mubr.bf16.mxu0 0
    %539 = vmatmul.mubr.bf16.gmra.mxu0 %v190
    %v540 = vpop.f32.mrf.mxu0
    %v541 = vadd.f32 0.0, %v540
    %v542 = vpop.f32.mrf.mxu0
    %v543 = vadd.f32 0.0, %v542
    %v544 = vpop.f32.mrf.mxu0
    %v545 = vadd.f32 0.0, %v544
    %v546 = vpop.f32.mrf.mxu0
    %v547 = vadd.f32 0.0, %v546
    %548 = vmatprep.mubr.bf16.mxu0 0
    %549 = vmatmul.mubr.bf16.gmra.mxu0 %v191
    %v550 = vpop.f32.mrf.mxu0
    %v551 = vadd.f32 0.0, %v550
    %v552 = vpop.f32.mrf.mxu0
    %v553 = vadd.f32 0.0, %v552
    %v554 = vpop.f32.mrf.mxu0
    %v555 = vadd.f32 0.0, %v554
    %v556 = vpop.f32.mrf.mxu0
    %v557 = vadd.f32 0.0, %v556
    %558 = vmatprep.mubr.bf16.mxu0 0
    %559 = vmatmul.mubr.bf16.gmra.mxu0 %v192
    %v560 = vpop.f32.mrf.mxu0
    %v561 = vadd.f32 0.0, %v560
    %v562 = vpop.f32.mrf.mxu0
    %v563 = vadd.f32 0.0, %v562
    %v564 = vpop.f32.mrf.mxu0
    %v565 = vadd.f32 0.0, %v564
    %v566 = vpop.f32.mrf.mxu0
    %v567 = vadd.f32 0.0, %v566
    %568 = vmatprep.mubr.bf16.mxu0 0
    %569 = vmatmul.mubr.bf16.gmra.mxu0 %v193
    %v570 = vpop.f32.mrf.mxu0
    %v571 = vadd.f32 0.0, %v570
    %v572 = vpop.f32.mrf.mxu0
    %v573 = vadd.f32 0.0, %v572
    %v574 = vpop.f32.mrf.mxu0
    %v575 = vadd.f32 0.0, %v574
    %v576 = vpop.f32.mrf.mxu0
    %v577 = vadd.f32 0.0, %v576
    %578 = vmatprep.mubr.bf16.mxu0 0
    %579 = vmatmul.mubr.bf16.gmra.mxu0 %v194
    %v580 = vpop.f32.mrf.mxu0
    %v581 = vadd.f32 0.0, %v580
    %v582 = vpop.f32.mrf.mxu0
    %v583 = vadd.f32 0.0, %v582
    %v584 = vpop.f32.mrf.mxu0
    %v585 = vadd.f32 0.0, %v584
    %v586 = vpop.f32.mrf.mxu0
    %v587 = vadd.f32 0.0, %v586
    %588 = vdwg.mxu0
    %v589 = vpack.c.bf16 %v402, %v398
    %v590 = vpack.c.bf16 %v404, %v400
    %v591 = vpack.c.bf16 %v515, %v511
    %v592 = vpack.c.bf16 %v517, %v513
    %v593 = vpack.c.bf16 %v412, %v408
    %v594 = vpack.c.bf16 %v414, %v410
    %v595 = vpack.c.bf16 %v525, %v521
    %v596 = vpack.c.bf16 %v527, %v523
    %v597 = vpack.c.bf16 %v422, %v418
    %v598 = vpack.c.bf16 %v424, %v420
    %v599 = vpack.c.bf16 %v535, %v531
    %v600 = vpack.c.bf16 %v537, %v533
    %v601 = vpack.c.bf16 %v432, %v428
    %v602 = vpack.c.bf16 %v434, %v430
    %v603 = vpack.c.bf16 %v545, %v541
    %v604 = vpack.c.bf16 %v547, %v543
    %v605 = vpack.c.bf16 %v442, %v438
    %v606 = vpack.c.bf16 %v444, %v440
    %v607 = vpack.c.bf16 %v555, %v551
    %v608 = vpack.c.bf16 %v557, %v553
    %v609 = vpack.c.bf16 %v452, %v448
    %v610 = vpack.c.bf16 %v454, %v450
    %v611 = vpack.c.bf16 %v565, %v561
    %v612 = vpack.c.bf16 %v567, %v563
    %v613 = vpack.c.bf16 %v462, %v458
    %v614 = vpack.c.bf16 %v464, %v460
    %v615 = vpack.c.bf16 %v575, %v571
    %v616 = vpack.c.bf16 %v577, %v573
    %v617 = vpack.c.bf16 %v472, %v468
    %v618 = vpack.c.bf16 %v474, %v470
    %v619 = vpack.c.bf16 %v585, %v581
    %v620 = vpack.c.bf16 %v587, %v583
    %v621 = vld [vmem:[%s2] sm:$0xf]
    %v624 = vunpack.c.l.s4 1966171168
    %v625 = vunpack.c.0.s8 %v624
    %v626 = vlaneseq
    %v627 = vshrl.u32 %v626, 7
    %v628 = vsub.s32 %v625, %v627
    %v629 = vrot.slane %v621, %v628
    %v630 = vcombine.high %v629, %v629
    %v632 = vunpack.c.l.s4 1966171168
    %v633 = vunpack.c.0.s8 %v632
    %v634 = vlaneseq
    %v635 = vshrl.u32 %v634, 7
    %v636 = vsub.s32 %v633, %v635
    %v637 = vrot.slane %v629, %v636
    %v639 = vunpack.c.l.s4 1966171168
    %v640 = vunpack.c.0.s8 %v639
    %v641 = vlaneseq
    %v642 = vshrl.u32 %v641, 7
    %v643 = vsub.s32 %v640, %v642
    %v644 = vrot.slane %v630, %v643
    %v645 = vcombine.high %v637, %v637
    %v646 = vcombine.high %v644, %v644
    %v648 = vpack.i.b16 %v637, %v637
    %v650 = vlaneseq
    %v651 = vshrl.u32 %v650, 7
    %v652 = vsub.s32 0, %v651
    %v653 = vrot.slane %v648, %v652
    %v655 = vpack.i.b16 %v644, %v644
    %v657 = vlaneseq
    %v658 = vshrl.u32 %v657, 7
    %v659 = vsub.s32 0, %v658
    %v660 = vrot.slane %v655, %v659
    %v662 = vpack.i.b16 %v645, %v645
    %v664 = vlaneseq
    %v665 = vshrl.u32 %v664, 7
    %v666 = vsub.s32 0, %v665
    %v667 = vrot.slane %v662, %v666
    %v669 = vpack.i.b16 %v646, %v646
    %v671 = vlaneseq
    %v672 = vshrl.u32 %v671, 7
    %v673 = vsub.s32 0, %v672
    %v674 = vrot.slane %v669, %v673
    %v675 = vadd.bf16 %v589, %v653
    %v676 = vadd.bf16 %v590, %v660
    %v677 = vadd.bf16 %v591, %v667
    %v678 = vadd.bf16 %v592, %v674
    %v679 = vadd.bf16 %v593, %v653
    %v680 = vadd.bf16 %v594, %v660
    %v681 = vadd.bf16 %v595, %v667
    %v682 = vadd.bf16 %v596, %v674
    %v683 = vadd.bf16 %v597, %v653
    %v684 = vadd.bf16 %v598, %v660
    %v685 = vadd.bf16 %v599, %v667
    %v686 = vadd.bf16 %v600, %v674
    %v687 = vadd.bf16 %v601, %v653
    %v688 = vadd.bf16 %v602, %v660
    %v689 = vadd.bf16 %v603, %v667
    %v690 = vadd.bf16 %v604, %v674
    %v691 = vadd.bf16 %v605, %v653
    %v692 = vadd.bf16 %v606, %v660
    %v693 = vadd.bf16 %v607, %v667
    %v694 = vadd.bf16 %v608, %v674
    %v695 = vadd.bf16 %v609, %v653
    %v696 = vadd.bf16 %v610, %v660
    %v697 = vadd.bf16 %v611, %v667
    %v698 = vadd.bf16 %v612, %v674
    %v699 = vadd.bf16 %v613, %v653
    %v700 = vadd.bf16 %v614, %v660
    %v701 = vadd.bf16 %v615, %v667
    %v702 = vadd.bf16 %v616, %v674
    %v703 = vadd.bf16 %v617, %v653
    %v704 = vadd.bf16 %v618, %v660
    %v705 = vadd.bf16 %v619, %v667
    %v706 = vadd.bf16 %v620, %v674
    %v707 = vmax.bf16 %v675, 0
    %v708 = vmax.bf16 %v676, 0
    %v709 = vmax.bf16 %v677, 0
    %v710 = vmax.bf16 %v678, 0
    %v711 = vmax.bf16 %v679, 0
    %v712 = vmax.bf16 %v680, 0
    %v713 = vmax.bf16 %v681, 0
    %v714 = vmax.bf16 %v682, 0
    %v715 = vmax.bf16 %v683, 0
    %v716 = vmax.bf16 %v684, 0
    %v717 = vmax.bf16 %v685, 0
    %v718 = vmax.bf16 %v686, 0
    %v719 = vmax.bf16 %v687, 0
    %v720 = vmax.bf16 %v688, 0
    %v721 = vmax.bf16 %v689, 0
    %v722 = vmax.bf16 %v690, 0
    %v723 = vmax.bf16 %v691, 0
    %v724 = vmax.bf16 %v692, 0
    %v725 = vmax.bf16 %v693, 0
    %v726 = vmax.bf16 %v694, 0
    %v727 = vmax.bf16 %v695, 0
    %v728 = vmax.bf16 %v696, 0
    %v729 = vmax.bf16 %v697, 0
    %v730 = vmax.bf16 %v698, 0
    %v731 = vmax.bf16 %v699, 0
    %v732 = vmax.bf16 %v700, 0
    %v733 = vmax.bf16 %v701, 0
    %v734 = vmax.bf16 %v702, 0
    %v735 = vmax.bf16 %v703, 0
    %v736 = vmax.bf16 %v704, 0
    %v737 = vmax.bf16 %v705, 0
    %v738 = vmax.bf16 %v706, 0
    %v739 = vld [vmem:[#allocation8] sm:$0xff]
    %v740 = vld [vmem:[#allocation8 + $0x8] sm:$0xf]
    %v741 = vld [vmem:[#allocation8 + $0xc] sm:$0xff]
    %v742 = vld [vmem:[#allocation8 + $0x14] sm:$0xf]
    %v743 = vld [vmem:[#allocation8 + $0x18] sm:$0xff]
    %v744 = vld [vmem:[#allocation8 + $0x20] sm:$0xf]
    %v745 = vld [vmem:[#allocation8 + $0x24] sm:$0xff]
    %v746 = vld [vmem:[#allocation8 + $0x2c] sm:$0xf]
    %v747 = vld [vmem:[#allocation8 + $0x30] sm:$0xff]
    %v748 = vld [vmem:[#allocation8 + $0x38] sm:$0xf]
    %v749 = vld [vmem:[#allocation8 + $0x3c] sm:$0xff]
    %v750 = vld [vmem:[#allocation8 + $0x44] sm:$0xf]
    %v751 = vld [vmem:[#allocation8 + $0x48] sm:$0xff]
    %v752 = vld [vmem:[#allocation8 + $0x50] sm:$0xf]
    %v753 = vld [vmem:[#allocation8 + $0x54] sm:$0xff]
    %v754 = vld [vmem:[#allocation8 + $0x5c] sm:$0xf]
    %v755 = vld [vmem:[#allocation8 + $0x60] sm:$0xff]
    %v756 = vld [vmem:[#allocation8 + $0x68] sm:$0xf]
    %v757 = vld [vmem:[#allocation8 + $0x6c] sm:$0xff]
    %v758 = vld [vmem:[#allocation8 + $0x74] sm:$0xf]
    %v759 = vld [vmem:[#allocation8 + $0x78] sm:$0xff]
    %v760 = vld [vmem:[#allocation8 + $0x80] sm:$0xf]
    %v761 = vld [vmem:[#allocation8 + $0x84] sm:$0xff]
    %v762 = vld [vmem:[#allocation8 + $0x8c] sm:$0xf]
    %v763 = vld [vmem:[#allocation8 + $0x90] sm:$0xff]
    %v764 = vld [vmem:[#allocation8 + $0x98] sm:$0xf]
    %v765 = vld [vmem:[#allocation8 + $0x9c] sm:$0xff]
    %v766 = vld [vmem:[#allocation8 + $0xa4] sm:$0xf]
    %v767 = vld [vmem:[#allocation8 + $0xa8] sm:$0xff]
    %v768 = vld [vmem:[#allocation8 + $0xb0] sm:$0xf]
    %v769 = vld [vmem:[#allocation8 + $0xb4] sm:$0xff]
    %v770 = vld [vmem:[#allocation8 + $0xbc] sm:$0xf]
    %v771 = vld [vmem:[#allocation8 + $0xc0] sm:$0xff]
    %v772 = vld [vmem:[#allocation8 + $0xc8] sm:$0xf]
    %v773 = vld [vmem:[#allocation8 + $0xcc] sm:$0xff]
    %v774 = vld [vmem:[#allocation8 + $0xd4] sm:$0xf]
    %v775 = vld [vmem:[#allocation8 + $0xd8] sm:$0xff]
    %v776 = vld [vmem:[#allocation8 + $0xe0] sm:$0xf]
    %v777 = vld [vmem:[#allocation8 + $0xe4] sm:$0xff]
    %v778 = vld [vmem:[#allocation8 + $0xec] sm:$0xf]
    %v779 = vld [vmem:[#allocation8 + $0xf0] sm:$0xff]
    %v780 = vld [vmem:[#allocation8 + $0xf8] sm:$0xf]
    %v781 = vld [vmem:[#allocation8 + $0xfc] sm:$0xff]
    %v782 = vld [vmem:[#allocation8 + $0x104] sm:$0xf]
    %v783 = vld [vmem:[#allocation8 + $0x108] sm:$0xff]
    %v784 = vld [vmem:[#allocation8 + $0x110] sm:$0xf]
    %v785 = vld [vmem:[#allocation8 + $0x114] sm:$0xff]
    %v786 = vld [vmem:[#allocation8 + $0x11c] sm:$0xf]
    %v787 = vld [vmem:[#allocation8 + $0x120] sm:$0xff]
    %v788 = vld [vmem:[#allocation8 + $0x128] sm:$0xf]
    %v789 = vld [vmem:[#allocation8 + $0x12c] sm:$0xff]
    %v790 = vld [vmem:[#allocation8 + $0x134] sm:$0xf]
    %v791 = vld [vmem:[#allocation8 + $0x138] sm:$0xff]
    %v792 = vld [vmem:[#allocation8 + $0x140] sm:$0xf]
    %v793 = vld [vmem:[#allocation8 + $0x144] sm:$0xff]
    %v794 = vld [vmem:[#allocation8 + $0x14c] sm:$0xf]
    %v795 = vld [vmem:[#allocation8 + $0x150] sm:$0xff]
    %v796 = vld [vmem:[#allocation8 + $0x158] sm:$0xf]
    %v797 = vld [vmem:[#allocation8 + $0x15c] sm:$0xff]
    %v798 = vld [vmem:[#allocation8 + $0x164] sm:$0xf]
    %v799 = vld [vmem:[#allocation8 + $0x168] sm:$0xff]
    %v800 = vld [vmem:[#allocation8 + $0x170] sm:$0xf]
    %v801 = vld [vmem:[#allocation8 + $0x174] sm:$0xff]
    %v802 = vld [vmem:[#allocation8 + $0x17c] sm:$0xf]
    %v803 = vld [vmem:[#allocation8 + $0x180] sm:$0xff]
    %v804 = vld [vmem:[#allocation8 + $0x188] sm:$0xf]
    %v805 = vld [vmem:[#allocation8 + $0x18c] sm:$0xff]
    %v806 = vld [vmem:[#allocation8 + $0x194] sm:$0xf]
    %v807 = vld [vmem:[#allocation8 + $0x198] sm:$0xff]
    %v808 = vld [vmem:[#allocation8 + $0x1a0] sm:$0xf]
    %v809 = vld [vmem:[#allocation8 + $0x1a4] sm:$0xff]
    %v810 = vld [vmem:[#allocation8 + $0x1ac] sm:$0xf]
    %v811 = vld [vmem:[#allocation8 + $0x1b0] sm:$0xff]
    %v812 = vld [vmem:[#allocation8 + $0x1b8] sm:$0xf]
    %v813 = vld [vmem:[#allocation8 + $0x1bc] sm:$0xff]
    %v814 = vld [vmem:[#allocation8 + $0x1c4] sm:$0xf]
    %v815 = vld [vmem:[#allocation8 + $0x1c8] sm:$0xff]
    %v816 = vld [vmem:[#allocation8 + $0x1d0] sm:$0xf]
    %v817 = vld [vmem:[#allocation8 + $0x1d4] sm:$0xff]
    %v818 = vld [vmem:[#allocation8 + $0x1dc] sm:$0xf]
    %v819 = vld [vmem:[#allocation8 + $0x1e0] sm:$0xff]
    %v820 = vld [vmem:[#allocation8 + $0x1e8] sm:$0xf]
    %v821 = vld [vmem:[#allocation8 + $0x1ec] sm:$0xff]
    %v822 = vld [vmem:[#allocation8 + $0x1f4] sm:$0xf]
    %v823 = vld [vmem:[#allocation8 + $0x1f8] sm:$0xff]
    %v824 = vld [vmem:[#allocation8 + $0x200] sm:$0xf]
    %v825 = vld [vmem:[#allocation8 + $0x204] sm:$0xff]
    %v826 = vld [vmem:[#allocation8 + $0x20c] sm:$0xf]
    %v827 = vld [vmem:[#allocation8 + $0x210] sm:$0xff]
    %v828 = vld [vmem:[#allocation8 + $0x218] sm:$0xf]
    %v829 = vld [vmem:[#allocation8 + $0x21c] sm:$0xff]
    %v830 = vld [vmem:[#allocation8 + $0x224] sm:$0xf]
    %v831 = vld [vmem:[#allocation8 + $0x228] sm:$0xff]
    %v832 = vld [vmem:[#allocation8 + $0x230] sm:$0xf]
    %v833 = vld [vmem:[#allocation8 + $0x234] sm:$0xff]
    %v834 = vld [vmem:[#allocation8 + $0x23c] sm:$0xf]
    %v835 = vld [vmem:[#allocation8 + $0x240] sm:$0xff]
    %v836 = vld [vmem:[#allocation8 + $0x248] sm:$0xf]
    %v837 = vld [vmem:[#allocation8 + $0x24c] sm:$0xff]
    %v838 = vld [vmem:[#allocation8 + $0x254] sm:$0xf]
    %v839 = vld [vmem:[#allocation8 + $0x258] sm:$0xff]
    %v840 = vld [vmem:[#allocation8 + $0x260] sm:$0xf]
    %v841 = vld [vmem:[#allocation8 + $0x264] sm:$0xff]
    %v842 = vld [vmem:[#allocation8 + $0x26c] sm:$0xf]
    %v843 = vld [vmem:[#allocation8 + $0x270] sm:$0xff]
    %v844 = vld [vmem:[#allocation8 + $0x278] sm:$0xf]
    %v845 = vld [vmem:[#allocation8 + $0x27c] sm:$0xff]
    %v846 = vld [vmem:[#allocation8 + $0x284] sm:$0xf]
    %v847 = vld [vmem:[#allocation8 + $0x288] sm:$0xff]
    %v848 = vld [vmem:[#allocation8 + $0x290] sm:$0xf]
    %v849 = vld [vmem:[#allocation8 + $0x294] sm:$0xff]
    %v850 = vld [vmem:[#allocation8 + $0x29c] sm:$0xf]
    %v851 = vld [vmem:[#allocation8 + $0x2a0] sm:$0xff]
    %v852 = vld [vmem:[#allocation8 + $0x2a8] sm:$0xf]
    %v853 = vld [vmem:[#allocation8 + $0x2ac] sm:$0xff]
    %v854 = vld [vmem:[#allocation8 + $0x2b4] sm:$0xf]
    %v855 = vld [vmem:[#allocation8 + $0x2b8] sm:$0xff]
    %v856 = vld [vmem:[#allocation8 + $0x2c0] sm:$0xf]
    %v857 = vld [vmem:[#allocation8 + $0x2c4] sm:$0xff]
    %v858 = vld [vmem:[#allocation8 + $0x2cc] sm:$0xf]
    %v859 = vld [vmem:[#allocation8 + $0x2d0] sm:$0xff]
    %v860 = vld [vmem:[#allocation8 + $0x2d8] sm:$0xf]
    %v861 = vld [vmem:[#allocation8 + $0x2dc] sm:$0xff]
    %v862 = vld [vmem:[#allocation8 + $0x2e4] sm:$0xf]
    %v863 = vld [vmem:[#allocation8 + $0x2e8] sm:$0xff]
    %v864 = vld [vmem:[#allocation8 + $0x2f0] sm:$0xf]
    %v865 = vld [vmem:[#allocation8 + $0x2f4] sm:$0xff]
    %v866 = vld [vmem:[#allocation8 + $0x2fc] sm:$0xf]
    %v867 = vld [vmem:[#allocation9] sm:$0xff]
    %v868 = vld [vmem:[#allocation9 + $0x8] sm:$0xf]
    %v869 = vld [vmem:[#allocation9 + $0xc] sm:$0xff]
    %v870 = vld [vmem:[#allocation9 + $0x14] sm:$0xf]
    %v871 = vld [vmem:[#allocation9 + $0x18] sm:$0xff]
    %v872 = vld [vmem:[#allocation9 + $0x20] sm:$0xf]
    %v873 = vld [vmem:[#allocation9 + $0x24] sm:$0xff]
    %v874 = vld [vmem:[#allocation9 + $0x2c] sm:$0xf]
    %v875 = vld [vmem:[#allocation9 + $0x30] sm:$0xff]
    %v876 = vld [vmem:[#allocation9 + $0x38] sm:$0xf]
    %v877 = vld [vmem:[#allocation9 + $0x3c] sm:$0xff]
    %v878 = vld [vmem:[#allocation9 + $0x44] sm:$0xf]
    %v879 = vld [vmem:[#allocation9 + $0x48] sm:$0xff]
    %v880 = vld [vmem:[#allocation9 + $0x50] sm:$0xf]
    %v881 = vld [vmem:[#allocation9 + $0x54] sm:$0xff]
    %v882 = vld [vmem:[#allocation9 + $0x5c] sm:$0xf]
    %v883 = vld [vmem:[#allocation9 + $0x60] sm:$0xff]
    %v884 = vld [vmem:[#allocation9 + $0x68] sm:$0xf]
    %v885 = vld [vmem:[#allocation9 + $0x6c] sm:$0xff]
    %v886 = vld [vmem:[#allocation9 + $0x74] sm:$0xf]
    %v887 = vld [vmem:[#allocation9 + $0x78] sm:$0xff]
    %v888 = vld [vmem:[#allocation9 + $0x80] sm:$0xf]
    %v889 = vld [vmem:[#allocation9 + $0x84] sm:$0xff]
    %v890 = vld [vmem:[#allocation9 + $0x8c] sm:$0xf]
    %v891 = vld [vmem:[#allocation9 + $0x90] sm:$0xff]
    %v892 = vld [vmem:[#allocation9 + $0x98] sm:$0xf]
    %v893 = vld [vmem:[#allocation9 + $0x9c] sm:$0xff]
    %v894 = vld [vmem:[#allocation9 + $0xa4] sm:$0xf]
    %v895 = vld [vmem:[#allocation9 + $0xa8] sm:$0xff]
    %v896 = vld [vmem:[#allocation9 + $0xb0] sm:$0xf]
    %v897 = vld [vmem:[#allocation9 + $0xb4] sm:$0xff]
    %v898 = vld [vmem:[#allocation9 + $0xbc] sm:$0xf]
    %v931 = vunpack.c.l.b16 %v867
    %v932 = vunpack.c.h.b16 %v867
    %v933 = vunpack.c.l.b16 %v868
    %v934 = vunpack.c.l.b16 %v869
    %v935 = vunpack.c.h.b16 %v869
    %v936 = vunpack.c.l.b16 %v870
    %v937 = vunpack.c.l.b16 %v871
    %v938 = vunpack.c.h.b16 %v871
    %v939 = vunpack.c.l.b16 %v872
    %v940 = vunpack.c.l.b16 %v873
    %v941 = vunpack.c.h.b16 %v873
    %v942 = vunpack.c.l.b16 %v874
    %v943 = vunpack.c.l.b16 %v875
    %v944 = vunpack.c.h.b16 %v875
    %v945 = vunpack.c.l.b16 %v876
    %v946 = vunpack.c.l.b16 %v877
    %v947 = vunpack.c.h.b16 %v877
    %v948 = vunpack.c.l.b16 %v878
    %v949 = vunpack.c.l.b16 %v879
    %v950 = vunpack.c.h.b16 %v879
    %v951 = vunpack.c.l.b16 %v880
    %v952 = vunpack.c.l.b16 %v881
    %v953 = vunpack.c.h.b16 %v881
    %v954 = vunpack.c.l.b16 %v882
    %v955 = vunpack.c.l.b16 %v883
    %v956 = vunpack.c.h.b16 %v883
    %v957 = vunpack.c.l.b16 %v884
    %v958 = vunpack.c.l.b16 %v885
    %v959 = vunpack.c.h.b16 %v885
    %v960 = vunpack.c.l.b16 %v886
    %v961 = vunpack.c.l.b16 %v887
    %v962 = vunpack.c.h.b16 %v887
    %v963 = vunpack.c.l.b16 %v888
    %v964 = vunpack.c.l.b16 %v889
    %v965 = vunpack.c.h.b16 %v889
    %v966 = vunpack.c.l.b16 %v890
    %v967 = vunpack.c.l.b16 %v891
    %v968 = vunpack.c.h.b16 %v891
    %v969 = vunpack.c.l.b16 %v892
    %v970 = vunpack.c.l.b16 %v893
    %v971 = vunpack.c.h.b16 %v893
    %v972 = vunpack.c.l.b16 %v894
    %v973 = vunpack.c.l.b16 %v895
    %v974 = vunpack.c.h.b16 %v895
    %v975 = vunpack.c.l.b16 %v896
    %v976 = vunpack.c.l.b16 %v897
    %v977 = vunpack.c.h.b16 %v897
    %v978 = vunpack.c.l.b16 %v898
    %v979 = vpack.c.b16 %v934, %v931
    %v980 = vpack.c.b16 %v935, %v932
    %v981 = vpack.c.b16 %v936, %v933
    %v982 = vpack.c.b16 %v940, %v937
    %v983 = vpack.c.b16 %v941, %v938
    %v984 = vpack.c.b16 %v942, %v939
    %v985 = vpack.c.b16 %v946, %v943
    %v986 = vpack.c.b16 %v947, %v944
    %v987 = vpack.c.b16 %v948, %v945
    %v988 = vpack.c.b16 %v952, %v949
    %v989 = vpack.c.b16 %v953, %v950
    %v990 = vpack.c.b16 %v954, %v951
    %v991 = vpack.c.b16 %v958, %v955
    %v992 = vpack.c.b16 %v959, %v956
    %v993 = vpack.c.b16 %v960, %v957
    %v994 = vpack.c.b16 %v964, %v961
    %v995 = vpack.c.b16 %v965, %v962
    %v996 = vpack.c.b16 %v966, %v963
    %v997 = vpack.c.b16 %v970, %v967
    %v998 = vpack.c.b16 %v971, %v968
    %v999 = vpack.c.b16 %v972, %v969
    %v1000 = vpack.c.b16 %v976, %v973
    %v1001 = vpack.c.b16 %v977, %v974
    %v1002 = vpack.c.b16 %v978, %v975
    %1027 = vmatprep.subr.bf16.mxu0 %v1001
    %1028 = vmatpush1.bf16.msra.mxu0 %v1000
    %1029 = vmatprep.subr.bf16.mxu0 %v998
    %1030 = vmatpush1.bf16.msra.mxu0 %v997
    %1031 = vmatprep.subr.bf16.mxu0 %v995
    %1032 = vmatpush1.bf16.msra.mxu0 %v994
    %1033 = vmatprep.subr.bf16.mxu0 %v992
    %1034 = vmatpush1.bf16.msra.mxu0 %v991
    %1035 = vmatprep.subr.bf16.mxu0 %v989
    %1036 = vmatpush1.bf16.msra.mxu0 %v988
    %1037 = vmatprep.subr.bf16.mxu0 %v986
    %1038 = vmatpush1.bf16.msra.mxu0 %v985
    %1039 = vmatprep.subr.bf16.mxu0 %v983
    %1040 = vmatpush1.bf16.msra.mxu0 %v982
    %1041 = vmatprep.subr.bf16.mxu0 %v980
    %1042 = vmatpush1.bf16.msra.mxu0 %v979
    %1043 = vmatprep.subr.bf16.mxu0 0
    %1044 = vmatpush2.bf16.msra.mxu0 0
    %1045 = vmatprep.subr.bf16.mxu0 0
    %1046 = vmatpush2.bf16.msra.mxu0 0
    %1047 = vmatprep.subr.bf16.mxu0 0
    %1048 = vmatpush2.bf16.msra.mxu0 0
    %1049 = vmatprep.subr.bf16.mxu0 0
    %1050 = vmatpush2.bf16.msra.mxu0 0
    %1051 = vmatprep.subr.bf16.mxu0 0
    %1052 = vmatpush2.bf16.msra.mxu0 0
    %1053 = vmatprep.subr.bf16.mxu0 0
    %1054 = vmatpush2.bf16.msra.mxu0 0
    %1055 = vmatprep.subr.bf16.mxu0 0
    %1056 = vmatpush2.bf16.msra.mxu0 0
    %1057 = vmatprep.subr.bf16.mxu0 0
    %1058 = vmatpush2.bf16.msra.mxu0 0
    %1059 = vmatprep.mubr.bf16.mxu0 0
    %1060 = vmatmul.mubr.bf16.gmra.mxu0 %v187
    %v1061 = vpop.f32.mrf.mxu0
    %v1062 = vadd.f32 0.0, %v1061
    %v1063 = vpop.f32.mrf.mxu0
    %v1064 = vadd.f32 0.0, %v1063
    %v1065 = vpop.f32.mrf.mxu0
    %v1066 = vadd.f32 0.0, %v1065
    %v1067 = vpop.f32.mrf.mxu0
    %v1068 = vadd.f32 0.0, %v1067
    %1069 = vmatprep.mubr.bf16.mxu0 0
    %1070 = vmatmul.mubr.bf16.gmra.mxu0 %v188
    %v1071 = vpop.f32.mrf.mxu0
    %v1072 = vadd.f32 0.0, %v1071
    %v1073 = vpop.f32.mrf.mxu0
    %v1074 = vadd.f32 0.0, %v1073
    %v1075 = vpop.f32.mrf.mxu0
    %v1076 = vadd.f32 0.0, %v1075
    %v1077 = vpop.f32.mrf.mxu0
    %v1078 = vadd.f32 0.0, %v1077
    %1079 = vmatprep.mubr.bf16.mxu0 0
    %1080 = vmatmul.mubr.bf16.gmra.mxu0 %v189
    %v1081 = vpop.f32.mrf.mxu0
    %v1082 = vadd.f32 0.0, %v1081
    %v1083 = vpop.f32.mrf.mxu0
    %v1084 = vadd.f32 0.0, %v1083
    %v1085 = vpop.f32.mrf.mxu0
    %v1086 = vadd.f32 0.0, %v1085
    %v1087 = vpop.f32.mrf.mxu0
    %v1088 = vadd.f32 0.0, %v1087
    %1089 = vmatprep.mubr.bf16.mxu0 0
    %1090 = vmatmul.mubr.bf16.gmra.mxu0 %v190
    %v1091 = vpop.f32.mrf.mxu0
    %v1092 = vadd.f32 0.0, %v1091
    %v1093 = vpop.f32.mrf.mxu0
    %v1094 = vadd.f32 0.0, %v1093
    %v1095 = vpop.f32.mrf.mxu0
    %v1096 = vadd.f32 0.0, %v1095
    %v1097 = vpop.f32.mrf.mxu0
    %v1098 = vadd.f32 0.0, %v1097
    %1099 = vmatprep.mubr.bf16.mxu0 0
    %1100 = vmatmul.mubr.bf16.gmra.mxu0 %v191
    %v1101 = vpop.f32.mrf.mxu0
    %v1102 = vadd.f32 0.0, %v1101
    %v1103 = vpop.f32.mrf.mxu0
    %v1104 = vadd.f32 0.0, %v1103
    %v1105 = vpop.f32.mrf.mxu0
    %v1106 = vadd.f32 0.0, %v1105
    %v1107 = vpop.f32.mrf.mxu0
    %v1108 = vadd.f32 0.0, %v1107
    %1109 = vmatprep.mubr.bf16.mxu0 0
    %1110 = vmatmul.mubr.bf16.gmra.mxu0 %v192
    %v1111 = vpop.f32.mrf.mxu0
    %v1112 = vadd.f32 0.0, %v1111
    %v1113 = vpop.f32.mrf.mxu0
    %v1114 = vadd.f32 0.0, %v1113
    %v1115 = vpop.f32.mrf.mxu0
    %v1116 = vadd.f32 0.0, %v1115
    %v1117 = vpop.f32.mrf.mxu0
    %v1118 = vadd.f32 0.0, %v1117
    %1119 = vmatprep.mubr.bf16.mxu0 0
    %1120 = vmatmul.mubr.bf16.gmra.mxu0 %v193
    %v1121 = vpop.f32.mrf.mxu0
    %v1122 = vadd.f32 0.0, %v1121
    %v1123 = vpop.f32.mrf.mxu0
    %v1124 = vadd.f32 0.0, %v1123
    %v1125 = vpop.f32.mrf.mxu0
    %v1126 = vadd.f32 0.0, %v1125
    %v1127 = vpop.f32.mrf.mxu0
    %v1128 = vadd.f32 0.0, %v1127
    %1129 = vmatprep.mubr.bf16.mxu0 0
    %1130 = vmatmul.mubr.bf16.gmra.mxu0 %v194
    %v1131 = vpop.f32.mrf.mxu0
    %v1132 = vadd.f32 0.0, %v1131
    %v1133 = vpop.f32.mrf.mxu0
    %v1134 = vadd.f32 0.0, %v1133
    %v1135 = vpop.f32.mrf.mxu0
    %v1136 = vadd.f32 0.0, %v1135
    %v1137 = vpop.f32.mrf.mxu0
    %v1138 = vadd.f32 0.0, %v1137
    %1139 = vdwg.mxu0
    %1140 = vmatprep.subr.bf16.mxu0 0
    %1141 = vmatpush1.bf16.msra.mxu0 %v1002
    %1142 = vmatprep.subr.bf16.mxu0 0
    %1143 = vmatpush1.bf16.msra.mxu0 %v999
    %1144 = vmatprep.subr.bf16.mxu0 0
    %1145 = vmatpush1.bf16.msra.mxu0 %v996
    %1146 = vmatprep.subr.bf16.mxu0 0
    %1147 = vmatpush1.bf16.msra.mxu0 %v993
    %1148 = vmatprep.subr.bf16.mxu0 0
    %1149 = vmatpush1.bf16.msra.mxu0 %v990
    %1150 = vmatprep.subr.bf16.mxu0 0
    %1151 = vmatpush1.bf16.msra.mxu0 %v987
    %1152 = vmatprep.subr.bf16.mxu0 0
    %1153 = vmatpush1.bf16.msra.mxu0 %v984
    %1154 = vmatprep.subr.bf16.mxu0 0
    %1155 = vmatpush1.bf16.msra.mxu0 %v981
    %1156 = vmatprep.subr.bf16.mxu0 0
    %1157 = vmatpush2.bf16.msra.mxu0 0
    %1158 = vmatprep.subr.bf16.mxu0 0
    %1159 = vmatpush2.bf16.msra.mxu0 0
    %1160 = vmatprep.subr.bf16.mxu0 0
    %1161 = vmatpush2.bf16.msra.mxu0 0
    %1162 = vmatprep.subr.bf16.mxu0 0
    %1163 = vmatpush2.bf16.msra.mxu0 0
    %1164 = vmatprep.subr.bf16.mxu0 0
    %1165 = vmatpush2.bf16.msra.mxu0 0
    %1166 = vmatprep.subr.bf16.mxu0 0
    %1167 = vmatpush2.bf16.msra.mxu0 0
    %1168 = vmatprep.subr.bf16.mxu0 0
    %1169 = vmatpush2.bf16.msra.mxu0 0
    %1170 = vmatprep.subr.bf16.mxu0 0
    %1171 = vmatpush2.bf16.msra.mxu0 0
    %1172 = vmatprep.mubr.bf16.mxu0 0
    %1173 = vmatmul.mubr.bf16.gmra.mxu0 %v187
    %v1174 = vpop.f32.mrf.mxu0
    %v1175 = vadd.f32 0.0, %v1174
    %v1176 = vpop.f32.mrf.mxu0
    %v1177 = vpop.f32.mrf.mxu0
    %v1178 = vadd.f32 0.0, %v1177
    %v1179 = vpop.f32.mrf.mxu0
    %1180 = vmatprep.mubr.bf16.mxu0 0
    %1181 = vmatmul.mubr.bf16.gmra.mxu0 %v188
    %v1182 = vpop.f32.mrf.mxu0
    %v1183 = vadd.f32 0.0, %v1182
    %v1184 = vpop.f32.mrf.mxu0
    %v1185 = vpop.f32.mrf.mxu0
    %v1186 = vadd.f32 0.0, %v1185
    %v1187 = vpop.f32.mrf.mxu0
    %1188 = vmatprep.mubr.bf16.mxu0 0
    %1189 = vmatmul.mubr.bf16.gmra.mxu0 %v189
    %v1190 = vpop.f32.mrf.mxu0
    %v1191 = vadd.f32 0.0, %v1190
    %v1192 = vpop.f32.mrf.mxu0
    %v1193 = vpop.f32.mrf.mxu0
    %v1194 = vadd.f32 0.0, %v1193
    %v1195 = vpop.f32.mrf.mxu0
    %1196 = vmatprep.mubr.bf16.mxu0 0
    %1197 = vmatmul.mubr.bf16.gmra.mxu0 %v190
    %v1198 = vpop.f32.mrf.mxu0
    %v1199 = vadd.f32 0.0, %v1198
    %v1200 = vpop.f32.mrf.mxu0
    %v1201 = vpop.f32.mrf.mxu0
    %v1202 = vadd.f32 0.0, %v1201
    %v1203 = vpop.f32.mrf.mxu0
    %1204 = vmatprep.mubr.bf16.mxu0 0
    %1205 = vmatmul.mubr.bf16.gmra.mxu0 %v191
    %v1206 = vpop.f32.mrf.mxu0
    %v1207 = vadd.f32 0.0, %v1206
    %v1208 = vpop.f32.mrf.mxu0
    %v1209 = vpop.f32.mrf.mxu0
    %v1210 = vadd.f32 0.0, %v1209
    %v1211 = vpop.f32.mrf.mxu0
    %1212 = vmatprep.mubr.bf16.mxu0 0
    %1213 = vmatmul.mubr.bf16.gmra.mxu0 %v192
    %v1214 = vpop.f32.mrf.mxu0
    %v1215 = vadd.f32 0.0, %v1214
    %v1216 = vpop.f32.mrf.mxu0
    %v1217 = vpop.f32.mrf.mxu0
    %v1218 = vadd.f32 0.0, %v1217
    %v1219 = vpop.f32.mrf.mxu0
    %1220 = vmatprep.mubr.bf16.mxu0 0
    %1221 = vmatmul.mubr.bf16.gmra.mxu0 %v193
    %v1222 = vpop.f32.mrf.mxu0
    %v1223 = vadd.f32 0.0, %v1222
    %v1224 = vpop.f32.mrf.mxu0
    %v1225 = vpop.f32.mrf.mxu0
    %v1226 = vadd.f32 0.0, %v1225
    %v1227 = vpop.f32.mrf.mxu0
    %1228 = vmatprep.mubr.bf16.mxu0 0
    %1229 = vmatmul.mubr.bf16.gmra.mxu0 %v194
    %v1230 = vpop.f32.mrf.mxu0
    %v1231 = vadd.f32 0.0, %v1230
    %v1232 = vpop.f32.mrf.mxu0
    %v1233 = vpop.f32.mrf.mxu0
    %v1234 = vadd.f32 0.0, %v1233
    %v1235 = vpop.f32.mrf.mxu0
    %1236 = vdwg.mxu0
    %v1365 = vunpack.c.l.b16 %v739
    %v1366 = vunpack.c.h.b16 %v739
    %v1367 = vunpack.c.l.b16 %v740
    %v1368 = vunpack.c.l.b16 %v741
    %v1369 = vunpack.c.h.b16 %v741
    %v1370 = vunpack.c.l.b16 %v742
    %v1371 = vunpack.c.l.b16 %v743
    %v1372 = vunpack.c.h.b16 %v743
    %v1373 = vunpack.c.l.b16 %v744
    %v1374 = vunpack.c.l.b16 %v745
    %v1375 = vunpack.c.h.b16 %v745
    %v1376 = vunpack.c.l.b16 %v746
    %v1377 = vunpack.c.l.b16 %v747
    %v1378 = vunpack.c.h.b16 %v747
    %v1379 = vunpack.c.l.b16 %v748
    %v1380 = vunpack.c.l.b16 %v749
    %v1381 = vunpack.c.h.b16 %v749
    %v1382 = vunpack.c.l.b16 %v750
    %v1383 = vunpack.c.l.b16 %v751
    %v1384 = vunpack.c.h.b16 %v751
    %v1385 = vunpack.c.l.b16 %v752
    %v1386 = vunpack.c.l.b16 %v753
    %v1387 = vunpack.c.h.b16 %v753
    %v1388 = vunpack.c.l.b16 %v754
    %v1389 = vunpack.c.l.b16 %v755
    %v1390 = vunpack.c.h.b16 %v755
    %v1391 = vunpack.c.l.b16 %v756
    %v1392 = vunpack.c.l.b16 %v757
    %v1393 = vunpack.c.h.b16 %v757
    %v1394 = vunpack.c.l.b16 %v758
    %v1395 = vunpack.c.l.b16 %v759
    %v1396 = vunpack.c.h.b16 %v759
    %v1397 = vunpack.c.l.b16 %v760
    %v1398 = vunpack.c.l.b16 %v761
    %v1399 = vunpack.c.h.b16 %v761
    %v1400 = vunpack.c.l.b16 %v762
    %v1401 = vunpack.c.l.b16 %v763
    %v1402 = vunpack.c.h.b16 %v763
    %v1403 = vunpack.c.l.b16 %v764
    %v1404 = vunpack.c.l.b16 %v765
    %v1405 = vunpack.c.h.b16 %v765
    %v1406 = vunpack.c.l.b16 %v766
    %v1407 = vunpack.c.l.b16 %v767
    %v1408 = vunpack.c.h.b16 %v767
    %v1409 = vunpack.c.l.b16 %v768
    %v1410 = vunpack.c.l.b16 %v769
    %v1411 = vunpack.c.h.b16 %v769
    %v1412 = vunpack.c.l.b16 %v770
    %v1413 = vunpack.c.l.b16 %v771
    %v1414 = vunpack.c.h.b16 %v771
    %v1415 = vunpack.c.l.b16 %v772
    %v1416 = vunpack.c.l.b16 %v773
    %v1417 = vunpack.c.h.b16 %v773
    %v1418 = vunpack.c.l.b16 %v774
    %v1419 = vunpack.c.l.b16 %v775
    %v1420 = vunpack.c.h.b16 %v775
    %v1421 = vunpack.c.l.b16 %v776
    %v1422 = vunpack.c.l.b16 %v777
    %v1423 = vunpack.c.h.b16 %v777
    %v1424 = vunpack.c.l.b16 %v778
    %v1425 = vunpack.c.l.b16 %v779
    %v1426 = vunpack.c.h.b16 %v779
    %v1427 = vunpack.c.l.b16 %v780
    %v1428 = vunpack.c.l.b16 %v781
    %v1429 = vunpack.c.h.b16 %v781
    %v1430 = vunpack.c.l.b16 %v782
    %v1431 = vunpack.c.l.b16 %v783
    %v1432 = vunpack.c.h.b16 %v783
    %v1433 = vunpack.c.l.b16 %v784
    %v1434 = vunpack.c.l.b16 %v785
    %v1435 = vunpack.c.h.b16 %v785
    %v1436 = vunpack.c.l.b16 %v786
    %v1437 = vunpack.c.l.b16 %v787
    %v1438 = vunpack.c.h.b16 %v787
    %v1439 = vunpack.c.l.b16 %v788
    %v1440 = vunpack.c.l.b16 %v789
    %v1441 = vunpack.c.h.b16 %v789
    %v1442 = vunpack.c.l.b16 %v790
    %v1443 = vunpack.c.l.b16 %v791
    %v1444 = vunpack.c.h.b16 %v791
    %v1445 = vunpack.c.l.b16 %v792
    %v1446 = vunpack.c.l.b16 %v793
    %v1447 = vunpack.c.h.b16 %v793
    %v1448 = vunpack.c.l.b16 %v794
    %v1449 = vunpack.c.l.b16 %v795
    %v1450 = vunpack.c.h.b16 %v795
    %v1451 = vunpack.c.l.b16 %v796
    %v1452 = vunpack.c.l.b16 %v797
    %v1453 = vunpack.c.h.b16 %v797
    %v1454 = vunpack.c.l.b16 %v798
    %v1455 = vunpack.c.l.b16 %v799
    %v1456 = vunpack.c.h.b16 %v799
    %v1457 = vunpack.c.l.b16 %v800
    %v1458 = vunpack.c.l.b16 %v801
    %v1459 = vunpack.c.h.b16 %v801
    %v1460 = vunpack.c.l.b16 %v802
    %v1461 = vunpack.c.l.b16 %v803
    %v1462 = vunpack.c.h.b16 %v803
    %v1463 = vunpack.c.l.b16 %v804
    %v1464 = vunpack.c.l.b16 %v805
    %v1465 = vunpack.c.h.b16 %v805
    %v1466 = vunpack.c.l.b16 %v806
    %v1467 = vunpack.c.l.b16 %v807
    %v1468 = vunpack.c.h.b16 %v807
    %v1469 = vunpack.c.l.b16 %v808
    %v1470 = vunpack.c.l.b16 %v809
    %v1471 = vunpack.c.h.b16 %v809
    %v1472 = vunpack.c.l.b16 %v810
    %v1473 = vunpack.c.l.b16 %v811
    %v1474 = vunpack.c.h.b16 %v811
    %v1475 = vunpack.c.l.b16 %v812
    %v1476 = vunpack.c.l.b16 %v813
    %v1477 = vunpack.c.h.b16 %v813
    %v1478 = vunpack.c.l.b16 %v814
    %v1479 = vunpack.c.l.b16 %v815
    %v1480 = vunpack.c.h.b16 %v815
    %v1481 = vunpack.c.l.b16 %v816
    %v1482 = vunpack.c.l.b16 %v817
    %v1483 = vunpack.c.h.b16 %v817
    %v1484 = vunpack.c.l.b16 %v818
    %v1485 = vunpack.c.l.b16 %v819
    %v1486 = vunpack.c.h.b16 %v819
    %v1487 = vunpack.c.l.b16 %v820
    %v1488 = vunpack.c.l.b16 %v821
    %v1489 = vunpack.c.h.b16 %v821
    %v1490 = vunpack.c.l.b16 %v822
    %v1491 = vunpack.c.l.b16 %v823
    %v1492 = vunpack.c.h.b16 %v823
    %v1493 = vunpack.c.l.b16 %v824
    %v1494 = vunpack.c.l.b16 %v825
    %v1495 = vunpack.c.h.b16 %v825
    %v1496 = vunpack.c.l.b16 %v826
    %v1497 = vunpack.c.l.b16 %v827
    %v1498 = vunpack.c.h.b16 %v827
    %v1499 = vunpack.c.l.b16 %v828
    %v1500 = vunpack.c.l.b16 %v829
    %v1501 = vunpack.c.h.b16 %v829
    %v1502 = vunpack.c.l.b16 %v830
    %v1503 = vunpack.c.l.b16 %v831
    %v1504 = vunpack.c.h.b16 %v831
    %v1505 = vunpack.c.l.b16 %v832
    %v1506 = vunpack.c.l.b16 %v833
    %v1507 = vunpack.c.h.b16 %v833
    %v1508 = vunpack.c.l.b16 %v834
    %v1509 = vunpack.c.l.b16 %v835
    %v1510 = vunpack.c.h.b16 %v835
    %v1511 = vunpack.c.l.b16 %v836
    %v1512 = vunpack.c.l.b16 %v837
    %v1513 = vunpack.c.h.b16 %v837
    %v1514 = vunpack.c.l.b16 %v838
    %v1515 = vunpack.c.l.b16 %v839
    %v1516 = vunpack.c.h.b16 %v839
    %v1517 = vunpack.c.l.b16 %v840
    %v1518 = vunpack.c.l.b16 %v841
    %v1519 = vunpack.c.h.b16 %v841
    %v1520 = vunpack.c.l.b16 %v842
    %v1521 = vunpack.c.l.b16 %v843
    %v1522 = vunpack.c.h.b16 %v843
    %v1523 = vunpack.c.l.b16 %v844
    %v1524 = vunpack.c.l.b16 %v845
    %v1525 = vunpack.c.h.b16 %v845
    %v1526 = vunpack.c.l.b16 %v846
    %v1527 = vunpack.c.l.b16 %v847
    %v1528 = vunpack.c.h.b16 %v847
    %v1529 = vunpack.c.l.b16 %v848
    %v1530 = vunpack.c.l.b16 %v849
    %v1531 = vunpack.c.h.b16 %v849
    %v1532 = vunpack.c.l.b16 %v850
    %v1533 = vunpack.c.l.b16 %v851
    %v1534 = vunpack.c.h.b16 %v851
    %v1535 = vunpack.c.l.b16 %v852
    %v1536 = vunpack.c.l.b16 %v853
    %v1537 = vunpack.c.h.b16 %v853
    %v1538 = vunpack.c.l.b16 %v854
    %v1539 = vunpack.c.l.b16 %v855
    %v1540 = vunpack.c.h.b16 %v855
    %v1541 = vunpack.c.l.b16 %v856
    %v1542 = vunpack.c.l.b16 %v857
    %v1543 = vunpack.c.h.b16 %v857
    %v1544 = vunpack.c.l.b16 %v858
    %v1545 = vunpack.c.l.b16 %v859
    %v1546 = vunpack.c.h.b16 %v859
    %v1547 = vunpack.c.l.b16 %v860
    %v1548 = vunpack.c.l.b16 %v861
    %v1549 = vunpack.c.h.b16 %v861
    %v1550 = vunpack.c.l.b16 %v862
    %v1551 = vunpack.c.l.b16 %v863
    %v1552 = vunpack.c.h.b16 %v863
    %v1553 = vunpack.c.l.b16 %v864
    %v1554 = vunpack.c.l.b16 %v865
    %v1555 = vunpack.c.h.b16 %v865
    %v1556 = vunpack.c.l.b16 %v866
    %v1557 = vpack.c.b16 %v1368, %v1365
    %v1558 = vpack.c.b16 %v1369, %v1366
    %v1559 = vpack.c.b16 %v1370, %v1367
    %v1560 = vpack.c.b16 %v1374, %v1371
    %v1561 = vpack.c.b16 %v1375, %v1372
    %v1562 = vpack.c.b16 %v1376, %v1373
    %v1563 = vpack.c.b16 %v1380, %v1377
    %v1564 = vpack.c.b16 %v1381, %v1378
    %v1565 = vpack.c.b16 %v1382, %v1379
    %v1566 = vpack.c.b16 %v1386, %v1383
    %v1567 = vpack.c.b16 %v1387, %v1384
    %v1568 = vpack.c.b16 %v1388, %v1385
    %v1569 = vpack.c.b16 %v1392, %v1389
    %v1570 = vpack.c.b16 %v1393, %v1390
    %v1571 = vpack.c.b16 %v1394, %v1391
    %v1572 = vpack.c.b16 %v1398, %v1395
    %v1573 = vpack.c.b16 %v1399, %v1396
    %v1574 = vpack.c.b16 %v1400, %v1397
    %v1575 = vpack.c.b16 %v1404, %v1401
    %v1576 = vpack.c.b16 %v1405, %v1402
    %v1577 = vpack.c.b16 %v1406, %v1403
    %v1578 = vpack.c.b16 %v1410, %v1407
    %v1579 = vpack.c.b16 %v1411, %v1408
    %v1580 = vpack.c.b16 %v1412, %v1409
    %v1581 = vpack.c.b16 %v1416, %v1413
    %v1582 = vpack.c.b16 %v1417, %v1414
    %v1583 = vpack.c.b16 %v1418, %v1415
    %v1584 = vpack.c.b16 %v1422, %v1419
    %v1585 = vpack.c.b16 %v1423, %v1420
    %v1586 = vpack.c.b16 %v1424, %v1421
    %v1587 = vpack.c.b16 %v1428, %v1425
    %v1588 = vpack.c.b16 %v1429, %v1426
    %v1589 = vpack.c.b16 %v1430, %v1427
    %v1590 = vpack.c.b16 %v1434, %v1431
    %v1591 = vpack.c.b16 %v1435, %v1432
    %v1592 = vpack.c.b16 %v1436, %v1433
    %v1593 = vpack.c.b16 %v1440, %v1437
    %v1594 = vpack.c.b16 %v1441, %v1438
    %v1595 = vpack.c.b16 %v1442, %v1439
    %v1596 = vpack.c.b16 %v1446, %v1443
    %v1597 = vpack.c.b16 %v1447, %v1444
    %v1598 = vpack.c.b16 %v1448, %v1445
    %v1599 = vpack.c.b16 %v1452, %v1449
    %v1600 = vpack.c.b16 %v1453, %v1450
    %v1601 = vpack.c.b16 %v1454, %v1451
    %v1602 = vpack.c.b16 %v1458, %v1455
    %v1603 = vpack.c.b16 %v1459, %v1456
    %v1604 = vpack.c.b16 %v1460, %v1457
    %v1605 = vpack.c.b16 %v1464, %v1461
    %v1606 = vpack.c.b16 %v1465, %v1462
    %v1607 = vpack.c.b16 %v1466, %v1463
    %v1608 = vpack.c.b16 %v1470, %v1467
    %v1609 = vpack.c.b16 %v1471, %v1468
    %v1610 = vpack.c.b16 %v1472, %v1469
    %v1611 = vpack.c.b16 %v1476, %v1473
    %v1612 = vpack.c.b16 %v1477, %v1474
    %v1613 = vpack.c.b16 %v1478, %v1475
    %v1614 = vpack.c.b16 %v1482, %v1479
    %v1615 = vpack.c.b16 %v1483, %v1480
    %v1616 = vpack.c.b16 %v1484, %v1481
    %v1617 = vpack.c.b16 %v1488, %v1485
    %v1618 = vpack.c.b16 %v1489, %v1486
    %v1619 = vpack.c.b16 %v1490, %v1487
    %v1620 = vpack.c.b16 %v1494, %v1491
    %v1621 = vpack.c.b16 %v1495, %v1492
    %v1622 = vpack.c.b16 %v1496, %v1493
    %v1623 = vpack.c.b16 %v1500, %v1497
    %v1624 = vpack.c.b16 %v1501, %v1498
    %v1625 = vpack.c.b16 %v1502, %v1499
    %v1626 = vpack.c.b16 %v1506, %v1503
    %v1627 = vpack.c.b16 %v1507, %v1504
    %v1628 = vpack.c.b16 %v1508, %v1505
    %v1629 = vpack.c.b16 %v1512, %v1509
    %v1630 = vpack.c.b16 %v1513, %v1510
    %v1631 = vpack.c.b16 %v1514, %v1511
    %v1632 = vpack.c.b16 %v1518, %v1515
    %v1633 = vpack.c.b16 %v1519, %v1516
    %v1634 = vpack.c.b16 %v1520, %v1517
    %v1635 = vpack.c.b16 %v1524, %v1521
    %v1636 = vpack.c.b16 %v1525, %v1522
    %v1637 = vpack.c.b16 %v1526, %v1523
    %v1638 = vpack.c.b16 %v1530, %v1527
    %v1639 = vpack.c.b16 %v1531, %v1528
    %v1640 = vpack.c.b16 %v1532, %v1529
    %v1641 = vpack.c.b16 %v1536, %v1533
    %v1642 = vpack.c.b16 %v1537, %v1534
    %v1643 = vpack.c.b16 %v1538, %v1535
    %v1644 = vpack.c.b16 %v1542, %v1539
    %v1645 = vpack.c.b16 %v1543, %v1540
    %v1646 = vpack.c.b16 %v1544, %v1541
    %v1647 = vpack.c.b16 %v1548, %v1545
    %v1648 = vpack.c.b16 %v1549, %v1546
    %v1649 = vpack.c.b16 %v1550, %v1547
    %v1650 = vpack.c.b16 %v1554, %v1551
    %v1651 = vpack.c.b16 %v1555, %v1552
    %v1652 = vpack.c.b16 %v1556, %v1553
    %1749 = vmatprep.subr.bf16.mxu0 %v1579
    %1750 = vmatpush1.bf16.msra.mxu0 %v1578
    %1751 = vmatprep.subr.bf16.mxu0 %v1576
    %1752 = vmatpush1.bf16.msra.mxu0 %v1575
    %1753 = vmatprep.subr.bf16.mxu0 %v1573
    %1754 = vmatpush1.bf16.msra.mxu0 %v1572
    %1755 = vmatprep.subr.bf16.mxu0 %v1570
    %1756 = vmatpush1.bf16.msra.mxu0 %v1569
    %1757 = vmatprep.subr.bf16.mxu0 %v1567
    %1758 = vmatpush1.bf16.msra.mxu0 %v1566
    %1759 = vmatprep.subr.bf16.mxu0 %v1564
    %1760 = vmatpush1.bf16.msra.mxu0 %v1563
    %1761 = vmatprep.subr.bf16.mxu0 %v1561
    %1762 = vmatpush1.bf16.msra.mxu0 %v1560
    %1763 = vmatprep.subr.bf16.mxu0 %v1558
    %1764 = vmatpush1.bf16.msra.mxu0 %v1557
    %1765 = vmatprep.subr.bf16.mxu0 %v1603
    %1766 = vmatpush2.bf16.msra.mxu0 %v1602
    %1767 = vmatprep.subr.bf16.mxu0 %v1600
    %1768 = vmatpush2.bf16.msra.mxu0 %v1599
    %1769 = vmatprep.subr.bf16.mxu0 %v1597
    %1770 = vmatpush2.bf16.msra.mxu0 %v1596
    %1771 = vmatprep.subr.bf16.mxu0 %v1594
    %1772 = vmatpush2.bf16.msra.mxu0 %v1593
    %1773 = vmatprep.subr.bf16.mxu0 %v1591
    %1774 = vmatpush2.bf16.msra.mxu0 %v1590
    %1775 = vmatprep.subr.bf16.mxu0 %v1588
    %1776 = vmatpush2.bf16.msra.mxu0 %v1587
    %1777 = vmatprep.subr.bf16.mxu0 %v1585
    %1778 = vmatpush2.bf16.msra.mxu0 %v1584
    %1779 = vmatprep.subr.bf16.mxu0 %v1582
    %1780 = vmatpush2.bf16.msra.mxu0 %v1581
    %1781 = vmatprep.mubr.bf16.mxu0 %v708
    %1782 = vmatmul.mubr.bf16.gmra.mxu0 %v707
    %v1783 = vpop.f32.mrf.mxu0
    %v1784 = vadd.f32 %v1062, %v1783
    %v1785 = vpop.f32.mrf.mxu0
    %v1786 = vadd.f32 %v1064, %v1785
    %v1787 = vpop.f32.mrf.mxu0
    %v1788 = vadd.f32 %v1066, %v1787
    %v1789 = vpop.f32.mrf.mxu0
    %v1790 = vadd.f32 %v1068, %v1789
    %1791 = vmatprep.mubr.bf16.mxu0 %v712
    %1792 = vmatmul.mubr.bf16.gmra.mxu0 %v711
    %v1793 = vpop.f32.mrf.mxu0
    %v1794 = vadd.f32 %v1072, %v1793
    %v1795 = vpop.f32.mrf.mxu0
    %v1796 = vadd.f32 %v1074, %v1795
    %v1797 = vpop.f32.mrf.mxu0
    %v1798 = vadd.f32 %v1076, %v1797
    %v1799 = vpop.f32.mrf.mxu0
    %v1800 = vadd.f32 %v1078, %v1799
    %1801 = vmatprep.mubr.bf16.mxu0 %v716
    %1802 = vmatmul.mubr.bf16.gmra.mxu0 %v715
    %v1803 = vpop.f32.mrf.mxu0
    %v1804 = vadd.f32 %v1082, %v1803
    %v1805 = vpop.f32.mrf.mxu0
    %v1806 = vadd.f32 %v1084, %v1805
    %v1807 = vpop.f32.mrf.mxu0
    %v1808 = vadd.f32 %v1086, %v1807
    %v1809 = vpop.f32.mrf.mxu0
    %v1810 = vadd.f32 %v1088, %v1809
    %1811 = vmatprep.mubr.bf16.mxu0 %v720
    %1812 = vmatmul.mubr.bf16.gmra.mxu0 %v719
    %v1813 = vpop.f32.mrf.mxu0
    %v1814 = vadd.f32 %v1092, %v1813
    %v1815 = vpop.f32.mrf.mxu0
    %v1816 = vadd.f32 %v1094, %v1815
    %v1817 = vpop.f32.mrf.mxu0
    %v1818 = vadd.f32 %v1096, %v1817
    %v1819 = vpop.f32.mrf.mxu0
    %v1820 = vadd.f32 %v1098, %v1819
    %1821 = vmatprep.mubr.bf16.mxu0 %v724
    %1822 = vmatmul.mubr.bf16.gmra.mxu0 %v723
    %v1823 = vpop.f32.mrf.mxu0
    %v1824 = vadd.f32 %v1102, %v1823
    %v1825 = vpop.f32.mrf.mxu0
    %v1826 = vadd.f32 %v1104, %v1825
    %v1827 = vpop.f32.mrf.mxu0
    %v1828 = vadd.f32 %v1106, %v1827
    %v1829 = vpop.f32.mrf.mxu0
    %v1830 = vadd.f32 %v1108, %v1829
    %1831 = vmatprep.mubr.bf16.mxu0 %v728
    %1832 = vmatmul.mubr.bf16.gmra.mxu0 %v727
    %v1833 = vpop.f32.mrf.mxu0
    %v1834 = vadd.f32 %v1112, %v1833
    %v1835 = vpop.f32.mrf.mxu0
    %v1836 = vadd.f32 %v1114, %v1835
    %v1837 = vpop.f32.mrf.mxu0
    %v1838 = vadd.f32 %v1116, %v1837
    %v1839 = vpop.f32.mrf.mxu0
    %v1840 = vadd.f32 %v1118, %v1839
    %1841 = vmatprep.mubr.bf16.mxu0 %v732
    %1842 = vmatmul.mubr.bf16.gmra.mxu0 %v731
    %v1843 = vpop.f32.mrf.mxu0
    %v1844 = vadd.f32 %v1122, %v1843
    %v1845 = vpop.f32.mrf.mxu0
    %v1846 = vadd.f32 %v1124, %v1845
    %v1847 = vpop.f32.mrf.mxu0
    %v1848 = vadd.f32 %v1126, %v1847
    %v1849 = vpop.f32.mrf.mxu0
    %v1850 = vadd.f32 %v1128, %v1849
    %1851 = vmatprep.mubr.bf16.mxu0 %v736
    %1852 = vmatmul.mubr.bf16.gmra.mxu0 %v735
    %v1853 = vpop.f32.mrf.mxu0
    %v1854 = vadd.f32 %v1132, %v1853
    %v1855 = vpop.f32.mrf.mxu0
    %v1856 = vadd.f32 %v1134, %v1855
    %v1857 = vpop.f32.mrf.mxu0
    %v1858 = vadd.f32 %v1136, %v1857
    %v1859 = vpop.f32.mrf.mxu0
    %v1860 = vadd.f32 %v1138, %v1859
    %1861 = vdwg.mxu0
    %1862 = vmatprep.subr.bf16.mxu0 %v1627
    %1863 = vmatpush1.bf16.msra.mxu0 %v1626
    %1864 = vmatprep.subr.bf16.mxu0 %v1624
    %1865 = vmatpush1.bf16.msra.mxu0 %v1623
    %1866 = vmatprep.subr.bf16.mxu0 %v1621
    %1867 = vmatpush1.bf16.msra.mxu0 %v1620
    %1868 = vmatprep.subr.bf16.mxu0 %v1618
    %1869 = vmatpush1.bf16.msra.mxu0 %v1617
    %1870 = vmatprep.subr.bf16.mxu0 %v1615
    %1871 = vmatpush1.bf16.msra.mxu0 %v1614
    %1872 = vmatprep.subr.bf16.mxu0 %v1612
    %1873 = vmatpush1.bf16.msra.mxu0 %v1611
    %1874 = vmatprep.subr.bf16.mxu0 %v1609
    %1875 = vmatpush1.bf16.msra.mxu0 %v1608
    %1876 = vmatprep.subr.bf16.mxu0 %v1606
    %1877 = vmatpush1.bf16.msra.mxu0 %v1605
    %1878 = vmatprep.subr.bf16.mxu0 %v1651
    %1879 = vmatpush2.bf16.msra.mxu0 %v1650
    %1880 = vmatprep.subr.bf16.mxu0 %v1648
    %1881 = vmatpush2.bf16.msra.mxu0 %v1647
    %1882 = vmatprep.subr.bf16.mxu0 %v1645
    %1883 = vmatpush2.bf16.msra.mxu0 %v1644
    %1884 = vmatprep.subr.bf16.mxu0 %v1642
    %1885 = vmatpush2.bf16.msra.mxu0 %v1641
    %1886 = vmatprep.subr.bf16.mxu0 %v1639
    %1887 = vmatpush2.bf16.msra.mxu0 %v1638
    %1888 = vmatprep.subr.bf16.mxu0 %v1636
    %1889 = vmatpush2.bf16.msra.mxu0 %v1635
    %1890 = vmatprep.subr.bf16.mxu0 %v1633
    %1891 = vmatpush2.bf16.msra.mxu0 %v1632
    %1892 = vmatprep.subr.bf16.mxu0 %v1630
    %1893 = vmatpush2.bf16.msra.mxu0 %v1629
    %1894 = vmatprep.mubr.bf16.mxu0 %v710
    %1895 = vmatmul.mubr.bf16.gmra.mxu0 %v709
    %v1896 = vpop.f32.mrf.mxu0
    %v1897 = vadd.f32 %v1784, %v1896
    %v1898 = vpop.f32.mrf.mxu0
    %v1899 = vadd.f32 %v1786, %v1898
    %v1900 = vpop.f32.mrf.mxu0
    %v1901 = vadd.f32 %v1788, %v1900
    %v1902 = vpop.f32.mrf.mxu0
    %v1903 = vadd.f32 %v1790, %v1902
    %1904 = vmatprep.mubr.bf16.mxu0 %v714
    %1905 = vmatmul.mubr.bf16.gmra.mxu0 %v713
    %v1906 = vpop.f32.mrf.mxu0
    %v1907 = vadd.f32 %v1794, %v1906
    %v1908 = vpop.f32.mrf.mxu0
    %v1909 = vadd.f32 %v1796, %v1908
    %v1910 = vpop.f32.mrf.mxu0
    %v1911 = vadd.f32 %v1798, %v1910
    %v1912 = vpop.f32.mrf.mxu0
    %v1913 = vadd.f32 %v1800, %v1912
    %1914 = vmatprep.mubr.bf16.mxu0 %v718
    %1915 = vmatmul.mubr.bf16.gmra.mxu0 %v717
    %v1916 = vpop.f32.mrf.mxu0
    %v1917 = vadd.f32 %v1804, %v1916
    %v1918 = vpop.f32.mrf.mxu0
    %v1919 = vadd.f32 %v1806, %v1918
    %v1920 = vpop.f32.mrf.mxu0
    %v1921 = vadd.f32 %v1808, %v1920
    %v1922 = vpop.f32.mrf.mxu0
    %v1923 = vadd.f32 %v1810, %v1922
    %1924 = vmatprep.mubr.bf16.mxu0 %v722
    %1925 = vmatmul.mubr.bf16.gmra.mxu0 %v721
    %v1926 = vpop.f32.mrf.mxu0
    %v1927 = vadd.f32 %v1814, %v1926
    %v1928 = vpop.f32.mrf.mxu0
    %v1929 = vadd.f32 %v1816, %v1928
    %v1930 = vpop.f32.mrf.mxu0
    %v1931 = vadd.f32 %v1818, %v1930
    %v1932 = vpop.f32.mrf.mxu0
    %v1933 = vadd.f32 %v1820, %v1932
    %1934 = vmatprep.mubr.bf16.mxu0 %v726
    %1935 = vmatmul.mubr.bf16.gmra.mxu0 %v725
    %v1936 = vpop.f32.mrf.mxu0
    %v1937 = vadd.f32 %v1824, %v1936
    %v1938 = vpop.f32.mrf.mxu0
    %v1939 = vadd.f32 %v1826, %v1938
    %v1940 = vpop.f32.mrf.mxu0
    %v1941 = vadd.f32 %v1828, %v1940
    %v1942 = vpop.f32.mrf.mxu0
    %v1943 = vadd.f32 %v1830, %v1942
    %1944 = vmatprep.mubr.bf16.mxu0 %v730
    %1945 = vmatmul.mubr.bf16.gmra.mxu0 %v729
    %v1946 = vpop.f32.mrf.mxu0
    %v1947 = vadd.f32 %v1834, %v1946
    %v1948 = vpop.f32.mrf.mxu0
    %v1949 = vadd.f32 %v1836, %v1948
    %v1950 = vpop.f32.mrf.mxu0
    %v1951 = vadd.f32 %v1838, %v1950
    %v1952 = vpop.f32.mrf.mxu0
    %v1953 = vadd.f32 %v1840, %v1952
    %1954 = vmatprep.mubr.bf16.mxu0 %v734
    %1955 = vmatmul.mubr.bf16.gmra.mxu0 %v733
    %v1956 = vpop.f32.mrf.mxu0
    %v1957 = vadd.f32 %v1844, %v1956
    %v1958 = vpop.f32.mrf.mxu0
    %v1959 = vadd.f32 %v1846, %v1958
    %v1960 = vpop.f32.mrf.mxu0
    %v1961 = vadd.f32 %v1848, %v1960
    %v1962 = vpop.f32.mrf.mxu0
    %v1963 = vadd.f32 %v1850, %v1962
    %1964 = vmatprep.mubr.bf16.mxu0 %v738
    %1965 = vmatmul.mubr.bf16.gmra.mxu0 %v737
    %v1966 = vpop.f32.mrf.mxu0
    %v1967 = vadd.f32 %v1854, %v1966
    %v1968 = vpop.f32.mrf.mxu0
    %v1969 = vadd.f32 %v1856, %v1968
    %v1970 = vpop.f32.mrf.mxu0
    %v1971 = vadd.f32 %v1858, %v1970
    %v1972 = vpop.f32.mrf.mxu0
    %v1973 = vadd.f32 %v1860, %v1972
    %1974 = vdwg.mxu0
    %1975 = vmatprep.subr.bf16.mxu0 0
    %1976 = vmatpush1.bf16.msra.mxu0 %v1580
    %1977 = vmatprep.subr.bf16.mxu0 0
    %1978 = vmatpush1.bf16.msra.mxu0 %v1577
    %1979 = vmatprep.subr.bf16.mxu0 0
    %1980 = vmatpush1.bf16.msra.mxu0 %v1574
    %1981 = vmatprep.subr.bf16.mxu0 0
    %1982 = vmatpush1.bf16.msra.mxu0 %v1571
    %1983 = vmatprep.subr.bf16.mxu0 0
    %1984 = vmatpush1.bf16.msra.mxu0 %v1568
    %1985 = vmatprep.subr.bf16.mxu0 0
    %1986 = vmatpush1.bf16.msra.mxu0 %v1565
    %1987 = vmatprep.subr.bf16.mxu0 0
    %1988 = vmatpush1.bf16.msra.mxu0 %v1562
    %1989 = vmatprep.subr.bf16.mxu0 0
    %1990 = vmatpush1.bf16.msra.mxu0 %v1559
    %1991 = vmatprep.subr.bf16.mxu0 0
    %1992 = vmatpush2.bf16.msra.mxu0 %v1604
    %1993 = vmatprep.subr.bf16.mxu0 0
    %1994 = vmatpush2.bf16.msra.mxu0 %v1601
    %1995 = vmatprep.subr.bf16.mxu0 0
    %1996 = vmatpush2.bf16.msra.mxu0 %v1598
    %1997 = vmatprep.subr.bf16.mxu0 0
    %1998 = vmatpush2.bf16.msra.mxu0 %v1595
    %1999 = vmatprep.subr.bf16.mxu0 0
    %2000 = vmatpush2.bf16.msra.mxu0 %v1592
    %2001 = vmatprep.subr.bf16.mxu0 0
    %2002 = vmatpush2.bf16.msra.mxu0 %v1589
    %2003 = vmatprep.subr.bf16.mxu0 0
    %2004 = vmatpush2.bf16.msra.mxu0 %v1586
    %2005 = vmatprep.subr.bf16.mxu0 0
    %2006 = vmatpush2.bf16.msra.mxu0 %v1583
    %2007 = vmatprep.mubr.bf16.mxu0 %v708
    %2008 = vmatmul.mubr.bf16.gmra.mxu0 %v707
    %v2009 = vpop.f32.mrf.mxu0
    %v2010 = vadd.f32 %v1175, %v2009
    %v2011 = vpop.f32.mrf.mxu0
    %v2012 = vpop.f32.mrf.mxu0
    %v2013 = vadd.f32 %v1178, %v2012
    %v2014 = vpop.f32.mrf.mxu0
    %2015 = vmatprep.mubr.bf16.mxu0 %v712
    %2016 = vmatmul.mubr.bf16.gmra.mxu0 %v711
    %v2017 = vpop.f32.mrf.mxu0
    %v2018 = vadd.f32 %v1183, %v2017
    %v2019 = vpop.f32.mrf.mxu0
    %v2020 = vpop.f32.mrf.mxu0
    %v2021 = vadd.f32 %v1186, %v2020
    %v2022 = vpop.f32.mrf.mxu0
    %2023 = vmatprep.mubr.bf16.mxu0 %v716
    %2024 = vmatmul.mubr.bf16.gmra.mxu0 %v715
    %v2025 = vpop.f32.mrf.mxu0
    %v2026 = vadd.f32 %v1191, %v2025
    %v2027 = vpop.f32.mrf.mxu0
    %v2028 = vpop.f32.mrf.mxu0
    %v2029 = vadd.f32 %v1194, %v2028
    %v2030 = vpop.f32.mrf.mxu0
    %2031 = vmatprep.mubr.bf16.mxu0 %v720
    %2032 = vmatmul.mubr.bf16.gmra.mxu0 %v719
    %v2033 = vpop.f32.mrf.mxu0
    %v2034 = vadd.f32 %v1199, %v2033
    %v2035 = vpop.f32.mrf.mxu0
    %v2036 = vpop.f32.mrf.mxu0
    %v2037 = vadd.f32 %v1202, %v2036
    %v2038 = vpop.f32.mrf.mxu0
    %2039 = vmatprep.mubr.bf16.mxu0 %v724
    %2040 = vmatmul.mubr.bf16.gmra.mxu0 %v723
    %v2041 = vpop.f32.mrf.mxu0
    %v2042 = vadd.f32 %v1207, %v2041
    %v2043 = vpop.f32.mrf.mxu0
    %v2044 = vpop.f32.mrf.mxu0
    %v2045 = vadd.f32 %v1210, %v2044
    %v2046 = vpop.f32.mrf.mxu0
    %2047 = vmatprep.mubr.bf16.mxu0 %v728
    %2048 = vmatmul.mubr.bf16.gmra.mxu0 %v727
    %v2049 = vpop.f32.mrf.mxu0
    %v2050 = vadd.f32 %v1215, %v2049
    %v2051 = vpop.f32.mrf.mxu0
    %v2052 = vpop.f32.mrf.mxu0
    %v2053 = vadd.f32 %v1218, %v2052
    %v2054 = vpop.f32.mrf.mxu0
    %2055 = vmatprep.mubr.bf16.mxu0 %v732
    %2056 = vmatmul.mubr.bf16.gmra.mxu0 %v731
    %v2057 = vpop.f32.mrf.mxu0
    %v2058 = vadd.f32 %v1223, %v2057
    %v2059 = vpop.f32.mrf.mxu0
    %v2060 = vpop.f32.mrf.mxu0
    %v2061 = vadd.f32 %v1226, %v2060
    %v2062 = vpop.f32.mrf.mxu0
    %2063 = vmatprep.mubr.bf16.mxu0 %v736
    %2064 = vmatmul.mubr.bf16.gmra.mxu0 %v735
    %v2065 = vpop.f32.mrf.mxu0
    %v2066 = vadd.f32 %v1231, %v2065
    %v2067 = vpop.f32.mrf.mxu0
    %v2068 = vpop.f32.mrf.mxu0
    %v2069 = vadd.f32 %v1234, %v2068
    %v2070 = vpop.f32.mrf.mxu0
    %2071 = vdwg.mxu0
    %2072 = vmatprep.subr.bf16.mxu0 0
    %2073 = vmatpush1.bf16.msra.mxu0 %v1628
    %2074 = vmatprep.subr.bf16.mxu0 0
    %2075 = vmatpush1.bf16.msra.mxu0 %v1625
    %2076 = vmatprep.subr.bf16.mxu0 0
    %2077 = vmatpush1.bf16.msra.mxu0 %v1622
    %2078 = vmatprep.subr.bf16.mxu0 0
    %2079 = vmatpush1.bf16.msra.mxu0 %v1619
    %2080 = vmatprep.subr.bf16.mxu0 0
    %2081 = vmatpush1.bf16.msra.mxu0 %v1616
    %2082 = vmatprep.subr.bf16.mxu0 0
    %2083 = vmatpush1.bf16.msra.mxu0 %v1613
    %2084 = vmatprep.subr.bf16.mxu0 0
    %2085 = vmatpush1.bf16.msra.mxu0 %v1610
    %2086 = vmatprep.subr.bf16.mxu0 0
    %2087 = vmatpush1.bf16.msra.mxu0 %v1607
    %2088 = vmatprep.subr.bf16.mxu0 0
    %2089 = vmatpush2.bf16.msra.mxu0 %v1652
    %2090 = vmatprep.subr.bf16.mxu0 0
    %2091 = vmatpush2.bf16.msra.mxu0 %v1649
    %2092 = vmatprep.subr.bf16.mxu0 0
    %2093 = vmatpush2.bf16.msra.mxu0 %v1646
    %2094 = vmatprep.subr.bf16.mxu0 0
    %2095 = vmatpush2.bf16.msra.mxu0 %v1643
    %2096 = vmatprep.subr.bf16.mxu0 0
    %2097 = vmatpush2.bf16.msra.mxu0 %v1640
    %2098 = vmatprep.subr.bf16.mxu0 0
    %2099 = vmatpush2.bf16.msra.mxu0 %v1637
    %2100 = vmatprep.subr.bf16.mxu0 0
    %2101 = vmatpush2.bf16.msra.mxu0 %v1634
    %2102 = vmatprep.subr.bf16.mxu0 0
    %2103 = vmatpush2.bf16.msra.mxu0 %v1631
    %2104 = vmatprep.mubr.bf16.mxu0 %v710
    %2105 = vmatmul.mubr.bf16.gmra.mxu0 %v709
    %v2106 = vpop.f32.mrf.mxu0
    %v2107 = vadd.f32 %v2010, %v2106
    %v2108 = vpop.f32.mrf.mxu0
    %v2109 = vpop.f32.mrf.mxu0
    %v2110 = vadd.f32 %v2013, %v2109
    %v2111 = vpop.f32.mrf.mxu0
    %2112 = vmatprep.mubr.bf16.mxu0 %v714
    %2113 = vmatmul.mubr.bf16.gmra.mxu0 %v713
    %v2114 = vpop.f32.mrf.mxu0
    %v2115 = vadd.f32 %v2018, %v2114
    %v2116 = vpop.f32.mrf.mxu0
    %v2117 = vpop.f32.mrf.mxu0
    %v2118 = vadd.f32 %v2021, %v2117
    %v2119 = vpop.f32.mrf.mxu0
    %2120 = vmatprep.mubr.bf16.mxu0 %v718
    %2121 = vmatmul.mubr.bf16.gmra.mxu0 %v717
    %v2122 = vpop.f32.mrf.mxu0
    %v2123 = vadd.f32 %v2026, %v2122
    %v2124 = vpop.f32.mrf.mxu0
    %v2125 = vpop.f32.mrf.mxu0
    %v2126 = vadd.f32 %v2029, %v2125
    %v2127 = vpop.f32.mrf.mxu0
    %2128 = vmatprep.mubr.bf16.mxu0 %v722
    %2129 = vmatmul.mubr.bf16.gmra.mxu0 %v721
    %v2130 = vpop.f32.mrf.mxu0
    %v2131 = vadd.f32 %v2034, %v2130
    %v2132 = vpop.f32.mrf.mxu0
    %v2133 = vpop.f32.mrf.mxu0
    %v2134 = vadd.f32 %v2037, %v2133
    %v2135 = vpop.f32.mrf.mxu0
    %2136 = vmatprep.mubr.bf16.mxu0 %v726
    %2137 = vmatmul.mubr.bf16.gmra.mxu0 %v725
    %v2138 = vpop.f32.mrf.mxu0
    %v2139 = vadd.f32 %v2042, %v2138
    %v2140 = vpop.f32.mrf.mxu0
    %v2141 = vpop.f32.mrf.mxu0
    %v2142 = vadd.f32 %v2045, %v2141
    %v2143 = vpop.f32.mrf.mxu0
    %2144 = vmatprep.mubr.bf16.mxu0 %v730
    %2145 = vmatmul.mubr.bf16.gmra.mxu0 %v729
    %v2146 = vpop.f32.mrf.mxu0
    %v2147 = vadd.f32 %v2050, %v2146
    %v2148 = vpop.f32.mrf.mxu0
    %v2149 = vpop.f32.mrf.mxu0
    %v2150 = vadd.f32 %v2053, %v2149
    %v2151 = vpop.f32.mrf.mxu0
    %2152 = vmatprep.mubr.bf16.mxu0 %v734
    %2153 = vmatmul.mubr.bf16.gmra.mxu0 %v733
    %v2154 = vpop.f32.mrf.mxu0
    %v2155 = vadd.f32 %v2058, %v2154
    %v2156 = vpop.f32.mrf.mxu0
    %v2157 = vpop.f32.mrf.mxu0
    %v2158 = vadd.f32 %v2061, %v2157
    %v2159 = vpop.f32.mrf.mxu0
    %2160 = vmatprep.mubr.bf16.mxu0 %v738
    %2161 = vmatmul.mubr.bf16.gmra.mxu0 %v737
    %v2162 = vpop.f32.mrf.mxu0
    %v2163 = vadd.f32 %v2066, %v2162
    %v2164 = vpop.f32.mrf.mxu0
    %v2165 = vpop.f32.mrf.mxu0
    %v2166 = vadd.f32 %v2069, %v2165
    %v2167 = vpop.f32.mrf.mxu0
    %2168 = vdwg.mxu0
    %v2169 = vpack.c.bf16 %v1901, %v1897
    %v2170 = vpack.c.bf16 %v1903, %v1899
    %v2171 = vpack.c.bf16 %v2110, %v2107
    %v2172 = vpack.c.bf16 %v1911, %v1907
    %v2173 = vpack.c.bf16 %v1913, %v1909
    %v2174 = vpack.c.bf16 %v2118, %v2115
    %v2175 = vpack.c.bf16 %v1921, %v1917
    %v2176 = vpack.c.bf16 %v1923, %v1919
    %v2177 = vpack.c.bf16 %v2126, %v2123
    %v2178 = vpack.c.bf16 %v1931, %v1927
    %v2179 = vpack.c.bf16 %v1933, %v1929
    %v2180 = vpack.c.bf16 %v2134, %v2131
    %v2181 = vpack.c.bf16 %v1941, %v1937
    %v2182 = vpack.c.bf16 %v1943, %v1939
    %v2183 = vpack.c.bf16 %v2142, %v2139
    %v2184 = vpack.c.bf16 %v1951, %v1947
    %v2185 = vpack.c.bf16 %v1953, %v1949
    %v2186 = vpack.c.bf16 %v2150, %v2147
    %v2187 = vpack.c.bf16 %v1961, %v1957
    %v2188 = vpack.c.bf16 %v1963, %v1959
    %v2189 = vpack.c.bf16 %v2158, %v2155
    %v2190 = vpack.c.bf16 %v1971, %v1967
    %v2191 = vpack.c.bf16 %v1973, %v1969
    %v2192 = vpack.c.bf16 %v2166, %v2163
    %v2193 = vld [vmem:[%s5] sm:$0x7]
    %v2196 = vunpack.c.l.s4 1966171168
    %v2197 = vunpack.c.0.s8 %v2196
    %v2198 = vlaneseq
    %v2199 = vshrl.u32 %v2198, 7
    %v2200 = vsub.s32 %v2197, %v2199
    %v2201 = vrot.slane %v2193, %v2200
    %v2202 = vcombine.high %v2201, %v2201
    %v2204 = vunpack.c.l.s4 1966171168
    %v2205 = vunpack.c.0.s8 %v2204
    %v2206 = vlaneseq
    %v2207 = vshrl.u32 %v2206, 7
    %v2208 = vsub.s32 %v2205, %v2207
    %v2209 = vrot.slane %v2201, %v2208
    %v2211 = vunpack.c.l.s4 1966171168
    %v2212 = vunpack.c.0.s8 %v2211
    %v2213 = vlaneseq
    %v2214 = vshrl.u32 %v2213, 7
    %v2215 = vsub.s32 %v2212, %v2214
    %v2216 = vrot.slane %v2202, %v2215
    %v2217 = vcombine.high %v2209, %v2209
    %v2219 = vpack.i.b16 %v2209, %v2209
    %v2221 = vlaneseq
    %v2222 = vshrl.u32 %v2221, 7
    %v2223 = vsub.s32 0, %v2222
    %v2224 = vrot.slane %v2219, %v2223
    %v2226 = vpack.i.b16 %v2216, %v2216
    %v2228 = vlaneseq
    %v2229 = vshrl.u32 %v2228, 7
    %v2230 = vsub.s32 0, %v2229
    %v2231 = vrot.slane %v2226, %v2230
    %v2233 = vpack.i.b16 %v2217, %v2217
    %v2235 = vlaneseq
    %v2236 = vshrl.u32 %v2235, 7
    %v2237 = vsub.s32 0, %v2236
    %v2238 = vrot.slane %v2233, %v2237
    %v2239 = vadd.bf16 %v2169, %v2224
    %v2240 = vadd.bf16 %v2170, %v2231
    %v2241 = vadd.bf16 %v2171, %v2238
    %v2242 = vadd.bf16 %v2172, %v2224
    %v2243 = vadd.bf16 %v2173, %v2231
    %v2244 = vadd.bf16 %v2174, %v2238
    %v2245 = vadd.bf16 %v2175, %v2224
    %v2246 = vadd.bf16 %v2176, %v2231
    %v2247 = vadd.bf16 %v2177, %v2238
    %v2248 = vadd.bf16 %v2178, %v2224
    %v2249 = vadd.bf16 %v2179, %v2231
    %v2250 = vadd.bf16 %v2180, %v2238
    %v2251 = vadd.bf16 %v2181, %v2224
    %v2252 = vadd.bf16 %v2182, %v2231
    %v2253 = vadd.bf16 %v2183, %v2238
    %v2254 = vadd.bf16 %v2184, %v2224
    %v2255 = vadd.bf16 %v2185, %v2231
    %v2256 = vadd.bf16 %v2186, %v2238
    %v2257 = vadd.bf16 %v2187, %v2224
    %v2258 = vadd.bf16 %v2188, %v2231
    %v2259 = vadd.bf16 %v2189, %v2238
    %v2260 = vadd.bf16 %v2190, %v2224
    %v2261 = vadd.bf16 %v2191, %v2231
    %v2262 = vadd.bf16 %v2192, %v2238
    %v2263 = vmax.bf16 %v2239, 0
    %v2264 = vmax.bf16 %v2240, 0
    %v2265 = vmax.bf16 %v2241, 0
    %v2266 = vmax.bf16 %v2242, 0
    %v2267 = vmax.bf16 %v2243, 0
    %v2268 = vmax.bf16 %v2244, 0
    %v2269 = vmax.bf16 %v2245, 0
    %v2270 = vmax.bf16 %v2246, 0
    %v2271 = vmax.bf16 %v2247, 0
    %v2272 = vmax.bf16 %v2248, 0
    %v2273 = vmax.bf16 %v2249, 0
    %v2274 = vmax.bf16 %v2250, 0
    %v2275 = vmax.bf16 %v2251, 0
    %v2276 = vmax.bf16 %v2252, 0
    %v2277 = vmax.bf16 %v2253, 0
    %v2278 = vmax.bf16 %v2254, 0
    %v2279 = vmax.bf16 %v2255, 0
    %v2280 = vmax.bf16 %v2256, 0
    %v2281 = vmax.bf16 %v2257, 0
    %v2282 = vmax.bf16 %v2258, 0
    %v2283 = vmax.bf16 %v2259, 0
    %v2284 = vmax.bf16 %v2260, 0
    %v2285 = vmax.bf16 %v2261, 0
    %v2286 = vmax.bf16 %v2262, 0
    %v2287 = vld [vmem:[#allocation11] sm:$0xff]
    %v2288 = vld [vmem:[#allocation11 + $0x8] sm:$0xff]
    %v2289 = vld [vmem:[#allocation11 + $0x10] sm:$0xff]
    %v2290 = vld [vmem:[#allocation11 + $0x18] sm:$0xff]
    %v2291 = vld [vmem:[#allocation11 + $0x20] sm:$0xff]
    %v2292 = vld [vmem:[#allocation11 + $0x28] sm:$0xff]
    %v2293 = vld [vmem:[#allocation11 + $0x30] sm:$0xff]
    %v2294 = vld [vmem:[#allocation11 + $0x38] sm:$0xff]
    %v2295 = vld [vmem:[#allocation11 + $0x40] sm:$0xff]
    %v2296 = vld [vmem:[#allocation11 + $0x48] sm:$0xff]
    %v2297 = vld [vmem:[#allocation11 + $0x50] sm:$0xff]
    %v2298 = vld [vmem:[#allocation11 + $0x58] sm:$0xff]
    %v2299 = vld [vmem:[#allocation11 + $0x60] sm:$0xff]
    %v2300 = vld [vmem:[#allocation11 + $0x68] sm:$0xff]
    %v2301 = vld [vmem:[#allocation11 + $0x70] sm:$0xff]
    %v2302 = vld [vmem:[#allocation11 + $0x78] sm:$0xff]
    %v2303 = vld [vmem:[#allocation11 + $0x80] sm:$0xff]
    %v2304 = vld [vmem:[#allocation11 + $0x88] sm:$0xff]
    %v2305 = vld [vmem:[#allocation11 + $0x90] sm:$0xff]
    %v2306 = vld [vmem:[#allocation11 + $0x98] sm:$0xff]
    %v2307 = vld [vmem:[#allocation11 + $0xa0] sm:$0xff]
    %v2308 = vld [vmem:[#allocation11 + $0xa8] sm:$0xff]
    %v2309 = vld [vmem:[#allocation11 + $0xb0] sm:$0xff]
    %v2310 = vld [vmem:[#allocation11 + $0xb8] sm:$0xff]
    %v2311 = vld [vmem:[#allocation11 + $0xc0] sm:$0xff]
    %v2312 = vld [vmem:[#allocation11 + $0xc8] sm:$0xff]
    %v2313 = vld [vmem:[#allocation11 + $0xd0] sm:$0xff]
    %v2314 = vld [vmem:[#allocation11 + $0xd8] sm:$0xff]
    %v2315 = vld [vmem:[#allocation11 + $0xe0] sm:$0xff]
    %v2316 = vld [vmem:[#allocation11 + $0xe8] sm:$0xff]
    %v2317 = vld [vmem:[#allocation11 + $0xf0] sm:$0xff]
    %v2318 = vld [vmem:[#allocation11 + $0xf8] sm:$0xff]
    %v2319 = vld [vmem:[#allocation11 + $0x100] sm:$0xff]
    %v2320 = vld [vmem:[#allocation11 + $0x108] sm:$0xff]
    %v2321 = vld [vmem:[#allocation11 + $0x110] sm:$0xff]
    %v2322 = vld [vmem:[#allocation11 + $0x118] sm:$0xff]
    %v2323 = vld [vmem:[#allocation11 + $0x120] sm:$0xff]
    %v2324 = vld [vmem:[#allocation11 + $0x128] sm:$0xff]
    %v2325 = vld [vmem:[#allocation11 + $0x130] sm:$0xff]
    %v2326 = vld [vmem:[#allocation11 + $0x138] sm:$0xff]
    %v2327 = vld [vmem:[#allocation11 + $0x140] sm:$0xff]
    %v2328 = vld [vmem:[#allocation11 + $0x148] sm:$0xff]
    %v2329 = vld [vmem:[#allocation11 + $0x150] sm:$0xff]
    %v2330 = vld [vmem:[#allocation11 + $0x158] sm:$0xff]
    %v2331 = vld [vmem:[#allocation11 + $0x160] sm:$0xff]
    %v2332 = vld [vmem:[#allocation11 + $0x168] sm:$0xff]
    %v2333 = vld [vmem:[#allocation11 + $0x170] sm:$0xff]
    %v2334 = vld [vmem:[#allocation11 + $0x178] sm:$0xff]
    %v2383 = vunpack.c.l.b16 %v2287
    %v2384 = vunpack.c.h.b16 %v2287
    %v2385 = vunpack.c.l.b16 %v2288
    %v2386 = vunpack.c.h.b16 %v2288
    %v2387 = vunpack.c.l.b16 %v2289
    %v2388 = vunpack.c.h.b16 %v2289
    %v2389 = vunpack.c.l.b16 %v2290
    %v2390 = vunpack.c.h.b16 %v2290
    %v2391 = vunpack.c.l.b16 %v2291
    %v2392 = vunpack.c.h.b16 %v2291
    %v2393 = vunpack.c.l.b16 %v2292
    %v2394 = vunpack.c.h.b16 %v2292
    %v2395 = vunpack.c.l.b16 %v2293
    %v2396 = vunpack.c.h.b16 %v2293
    %v2397 = vunpack.c.l.b16 %v2294
    %v2398 = vunpack.c.h.b16 %v2294
    %v2399 = vunpack.c.l.b16 %v2295
    %v2400 = vunpack.c.h.b16 %v2295
    %v2401 = vunpack.c.l.b16 %v2296
    %v2402 = vunpack.c.h.b16 %v2296
    %v2403 = vunpack.c.l.b16 %v2297
    %v2404 = vunpack.c.h.b16 %v2297
    %v2405 = vunpack.c.l.b16 %v2298
    %v2406 = vunpack.c.h.b16 %v2298
    %v2407 = vunpack.c.l.b16 %v2299
    %v2408 = vunpack.c.h.b16 %v2299
    %v2409 = vunpack.c.l.b16 %v2300
    %v2410 = vunpack.c.h.b16 %v2300
    %v2411 = vunpack.c.l.b16 %v2301
    %v2412 = vunpack.c.h.b16 %v2301
    %v2413 = vunpack.c.l.b16 %v2302
    %v2414 = vunpack.c.h.b16 %v2302
    %v2415 = vunpack.c.l.b16 %v2303
    %v2416 = vunpack.c.h.b16 %v2303
    %v2417 = vunpack.c.l.b16 %v2304
    %v2418 = vunpack.c.h.b16 %v2304
    %v2419 = vunpack.c.l.b16 %v2305
    %v2420 = vunpack.c.h.b16 %v2305
    %v2421 = vunpack.c.l.b16 %v2306
    %v2422 = vunpack.c.h.b16 %v2306
    %v2423 = vunpack.c.l.b16 %v2307
    %v2424 = vunpack.c.h.b16 %v2307
    %v2425 = vunpack.c.l.b16 %v2308
    %v2426 = vunpack.c.h.b16 %v2308
    %v2427 = vunpack.c.l.b16 %v2309
    %v2428 = vunpack.c.h.b16 %v2309
    %v2429 = vunpack.c.l.b16 %v2310
    %v2430 = vunpack.c.h.b16 %v2310
    %v2431 = vunpack.c.l.b16 %v2311
    %v2432 = vunpack.c.h.b16 %v2311
    %v2433 = vunpack.c.l.b16 %v2312
    %v2434 = vunpack.c.h.b16 %v2312
    %v2435 = vunpack.c.l.b16 %v2313
    %v2436 = vunpack.c.h.b16 %v2313
    %v2437 = vunpack.c.l.b16 %v2314
    %v2438 = vunpack.c.h.b16 %v2314
    %v2439 = vunpack.c.l.b16 %v2315
    %v2440 = vunpack.c.h.b16 %v2315
    %v2441 = vunpack.c.l.b16 %v2316
    %v2442 = vunpack.c.h.b16 %v2316
    %v2443 = vunpack.c.l.b16 %v2317
    %v2444 = vunpack.c.h.b16 %v2317
    %v2445 = vunpack.c.l.b16 %v2318
    %v2446 = vunpack.c.h.b16 %v2318
    %v2447 = vunpack.c.l.b16 %v2319
    %v2448 = vunpack.c.h.b16 %v2319
    %v2449 = vunpack.c.l.b16 %v2320
    %v2450 = vunpack.c.h.b16 %v2320
    %v2451 = vunpack.c.l.b16 %v2321
    %v2452 = vunpack.c.h.b16 %v2321
    %v2453 = vunpack.c.l.b16 %v2322
    %v2454 = vunpack.c.h.b16 %v2322
    %v2455 = vunpack.c.l.b16 %v2323
    %v2456 = vunpack.c.h.b16 %v2323
    %v2457 = vunpack.c.l.b16 %v2324
    %v2458 = vunpack.c.h.b16 %v2324
    %v2459 = vunpack.c.l.b16 %v2325
    %v2460 = vunpack.c.h.b16 %v2325
    %v2461 = vunpack.c.l.b16 %v2326
    %v2462 = vunpack.c.h.b16 %v2326
    %v2463 = vunpack.c.l.b16 %v2327
    %v2464 = vunpack.c.h.b16 %v2327
    %v2465 = vunpack.c.l.b16 %v2328
    %v2466 = vunpack.c.h.b16 %v2328
    %v2467 = vunpack.c.l.b16 %v2329
    %v2468 = vunpack.c.h.b16 %v2329
    %v2469 = vunpack.c.l.b16 %v2330
    %v2470 = vunpack.c.h.b16 %v2330
    %v2471 = vunpack.c.l.b16 %v2331
    %v2472 = vunpack.c.h.b16 %v2331
    %v2473 = vunpack.c.l.b16 %v2332
    %v2474 = vunpack.c.h.b16 %v2332
    %v2475 = vunpack.c.l.b16 %v2333
    %v2476 = vunpack.c.h.b16 %v2333
    %v2477 = vunpack.c.l.b16 %v2334
    %v2478 = vunpack.c.h.b16 %v2334
    %v2479 = vpack.c.b16 %v2385, %v2383
    %v2480 = vpack.c.b16 %v2386, %v2384
    %v2481 = vpack.c.b16 %v2389, %v2387
    %v2482 = vpack.c.b16 %v2390, %v2388
    %v2483 = vpack.c.b16 %v2393, %v2391
    %v2484 = vpack.c.b16 %v2394, %v2392
    %v2485 = vpack.c.b16 %v2397, %v2395
    %v2486 = vpack.c.b16 %v2398, %v2396
    %v2487 = vpack.c.b16 %v2401, %v2399
    %v2488 = vpack.c.b16 %v2402, %v2400
    %v2489 = vpack.c.b16 %v2405, %v2403
    %v2490 = vpack.c.b16 %v2406, %v2404
    %v2491 = vpack.c.b16 %v2409, %v2407
    %v2492 = vpack.c.b16 %v2410, %v2408
    %v2493 = vpack.c.b16 %v2413, %v2411
    %v2494 = vpack.c.b16 %v2414, %v2412
    %v2495 = vpack.c.b16 %v2417, %v2415
    %v2496 = vpack.c.b16 %v2418, %v2416
    %v2497 = vpack.c.b16 %v2421, %v2419
    %v2498 = vpack.c.b16 %v2422, %v2420
    %v2499 = vpack.c.b16 %v2425, %v2423
    %v2500 = vpack.c.b16 %v2426, %v2424
    %v2501 = vpack.c.b16 %v2429, %v2427
    %v2502 = vpack.c.b16 %v2430, %v2428
    %v2503 = vpack.c.b16 %v2433, %v2431
    %v2504 = vpack.c.b16 %v2434, %v2432
    %v2505 = vpack.c.b16 %v2437, %v2435
    %v2506 = vpack.c.b16 %v2438, %v2436
    %v2507 = vpack.c.b16 %v2441, %v2439
    %v2508 = vpack.c.b16 %v2442, %v2440
    %v2509 = vpack.c.b16 %v2445, %v2443
    %v2510 = vpack.c.b16 %v2446, %v2444
    %v2511 = vpack.c.b16 %v2449, %v2447
    %v2512 = vpack.c.b16 %v2450, %v2448
    %v2513 = vpack.c.b16 %v2453, %v2451
    %v2514 = vpack.c.b16 %v2454, %v2452
    %v2515 = vpack.c.b16 %v2457, %v2455
    %v2516 = vpack.c.b16 %v2458, %v2456
    %v2517 = vpack.c.b16 %v2461, %v2459
    %v2518 = vpack.c.b16 %v2462, %v2460
    %v2519 = vpack.c.b16 %v2465, %v2463
    %v2520 = vpack.c.b16 %v2466, %v2464
    %v2521 = vpack.c.b16 %v2469, %v2467
    %v2522 = vpack.c.b16 %v2470, %v2468
    %v2523 = vpack.c.b16 %v2473, %v2471
    %v2524 = vpack.c.b16 %v2474, %v2472
    %v2525 = vpack.c.b16 %v2477, %v2475
    %v2526 = vpack.c.b16 %v2478, %v2476
    %2575 = vmatprep.subr.bf16.mxu0 %v2494
    %2576 = vmatpush1.bf16.msra.mxu0 %v2493
    %2577 = vmatprep.subr.bf16.mxu0 %v2492
    %2578 = vmatpush1.bf16.msra.mxu0 %v2491
    %2579 = vmatprep.subr.bf16.mxu0 %v2490
    %2580 = vmatpush1.bf16.msra.mxu0 %v2489
    %2581 = vmatprep.subr.bf16.mxu0 %v2488
    %2582 = vmatpush1.bf16.msra.mxu0 %v2487
    %2583 = vmatprep.subr.bf16.mxu0 %v2486
    %2584 = vmatpush1.bf16.msra.mxu0 %v2485
    %2585 = vmatprep.subr.bf16.mxu0 %v2484
    %2586 = vmatpush1.bf16.msra.mxu0 %v2483
    %2587 = vmatprep.subr.bf16.mxu0 %v2482
    %2588 = vmatpush1.bf16.msra.mxu0 %v2481
    %2589 = vmatprep.subr.bf16.mxu0 %v2480
    %2590 = vmatpush1.bf16.msra.mxu0 %v2479
    %2591 = vmatprep.subr.bf16.mxu0 %v2510
    %2592 = vmatpush2.bf16.msra.mxu0 %v2509
    %2593 = vmatprep.subr.bf16.mxu0 %v2508
    %2594 = vmatpush2.bf16.msra.mxu0 %v2507
    %2595 = vmatprep.subr.bf16.mxu0 %v2506
    %2596 = vmatpush2.bf16.msra.mxu0 %v2505
    %2597 = vmatprep.subr.bf16.mxu0 %v2504
    %2598 = vmatpush2.bf16.msra.mxu0 %v2503
    %2599 = vmatprep.subr.bf16.mxu0 %v2502
    %2600 = vmatpush2.bf16.msra.mxu0 %v2501
    %2601 = vmatprep.subr.bf16.mxu0 %v2500
    %2602 = vmatpush2.bf16.msra.mxu0 %v2499
    %2603 = vmatprep.subr.bf16.mxu0 %v2498
    %2604 = vmatpush2.bf16.msra.mxu0 %v2497
    %2605 = vmatprep.subr.bf16.mxu0 %v2496
    %2606 = vmatpush2.bf16.msra.mxu0 %v2495
    %2607 = vmatprep.mubr.bf16.mxu0 %v2264
    %2608 = vmatmul.mubr.bf16.gmra.mxu0 %v2263
    %v2609 = vpop.f32.mrf.mxu0
    %v2610 = vadd.f32 0.0, %v2609
    %v2611 = vpop.f32.mrf.mxu0
    %v2612 = vadd.f32 0.0, %v2611
    %v2613 = vpop.f32.mrf.mxu0
    %v2614 = vadd.f32 0.0, %v2613
    %v2615 = vpop.f32.mrf.mxu0
    %v2616 = vadd.f32 0.0, %v2615
    %2617 = vmatprep.mubr.bf16.mxu0 %v2267
    %2618 = vmatmul.mubr.bf16.gmra.mxu0 %v2266
    %v2619 = vpop.f32.mrf.mxu0
    %v2620 = vadd.f32 0.0, %v2619
    %v2621 = vpop.f32.mrf.mxu0
    %v2622 = vadd.f32 0.0, %v2621
    %v2623 = vpop.f32.mrf.mxu0
    %v2624 = vadd.f32 0.0, %v2623
    %v2625 = vpop.f32.mrf.mxu0
    %v2626 = vadd.f32 0.0, %v2625
    %2627 = vmatprep.mubr.bf16.mxu0 %v2270
    %2628 = vmatmul.mubr.bf16.gmra.mxu0 %v2269
    %v2629 = vpop.f32.mrf.mxu0
    %v2630 = vadd.f32 0.0, %v2629
    %v2631 = vpop.f32.mrf.mxu0
    %v2632 = vadd.f32 0.0, %v2631
    %v2633 = vpop.f32.mrf.mxu0
    %v2634 = vadd.f32 0.0, %v2633
    %v2635 = vpop.f32.mrf.mxu0
    %v2636 = vadd.f32 0.0, %v2635
    %2637 = vmatprep.mubr.bf16.mxu0 %v2273
    %2638 = vmatmul.mubr.bf16.gmra.mxu0 %v2272
    %v2639 = vpop.f32.mrf.mxu0
    %v2640 = vadd.f32 0.0, %v2639
    %v2641 = vpop.f32.mrf.mxu0
    %v2642 = vadd.f32 0.0, %v2641
    %v2643 = vpop.f32.mrf.mxu0
    %v2644 = vadd.f32 0.0, %v2643
    %v2645 = vpop.f32.mrf.mxu0
    %v2646 = vadd.f32 0.0, %v2645
    %2647 = vmatprep.mubr.bf16.mxu0 %v2276
    %2648 = vmatmul.mubr.bf16.gmra.mxu0 %v2275
    %v2649 = vpop.f32.mrf.mxu0
    %v2650 = vadd.f32 0.0, %v2649
    %v2651 = vpop.f32.mrf.mxu0
    %v2652 = vadd.f32 0.0, %v2651
    %v2653 = vpop.f32.mrf.mxu0
    %v2654 = vadd.f32 0.0, %v2653
    %v2655 = vpop.f32.mrf.mxu0
    %v2656 = vadd.f32 0.0, %v2655
    %2657 = vmatprep.mubr.bf16.mxu0 %v2279
    %2658 = vmatmul.mubr.bf16.gmra.mxu0 %v2278
    %v2659 = vpop.f32.mrf.mxu0
    %v2660 = vadd.f32 0.0, %v2659
    %v2661 = vpop.f32.mrf.mxu0
    %v2662 = vadd.f32 0.0, %v2661
    %v2663 = vpop.f32.mrf.mxu0
    %v2664 = vadd.f32 0.0, %v2663
    %v2665 = vpop.f32.mrf.mxu0
    %v2666 = vadd.f32 0.0, %v2665
    %2667 = vmatprep.mubr.bf16.mxu0 %v2282
    %2668 = vmatmul.mubr.bf16.gmra.mxu0 %v2281
    %v2669 = vpop.f32.mrf.mxu0
    %v2670 = vadd.f32 0.0, %v2669
    %v2671 = vpop.f32.mrf.mxu0
    %v2672 = vadd.f32 0.0, %v2671
    %v2673 = vpop.f32.mrf.mxu0
    %v2674 = vadd.f32 0.0, %v2673
    %v2675 = vpop.f32.mrf.mxu0
    %v2676 = vadd.f32 0.0, %v2675
    %2677 = vmatprep.mubr.bf16.mxu0 %v2285
    %2678 = vmatmul.mubr.bf16.gmra.mxu0 %v2284
    %v2679 = vpop.f32.mrf.mxu0
    %v2680 = vadd.f32 0.0, %v2679
    %v2681 = vpop.f32.mrf.mxu0
    %v2682 = vadd.f32 0.0, %v2681
    %v2683 = vpop.f32.mrf.mxu0
    %v2684 = vadd.f32 0.0, %v2683
    %v2685 = vpop.f32.mrf.mxu0
    %v2686 = vadd.f32 0.0, %v2685
    %2687 = vdwg.mxu0
    %2688 = vmatprep.subr.bf16.mxu0 %v2526
    %2689 = vmatpush1.bf16.msra.mxu0 %v2525
    %2690 = vmatprep.subr.bf16.mxu0 %v2524
    %2691 = vmatpush1.bf16.msra.mxu0 %v2523
    %2692 = vmatprep.subr.bf16.mxu0 %v2522
    %2693 = vmatpush1.bf16.msra.mxu0 %v2521
    %2694 = vmatprep.subr.bf16.mxu0 %v2520
    %2695 = vmatpush1.bf16.msra.mxu0 %v2519
    %2696 = vmatprep.subr.bf16.mxu0 %v2518
    %2697 = vmatpush1.bf16.msra.mxu0 %v2517
    %2698 = vmatprep.subr.bf16.mxu0 %v2516
    %2699 = vmatpush1.bf16.msra.mxu0 %v2515
    %2700 = vmatprep.subr.bf16.mxu0 %v2514
    %2701 = vmatpush1.bf16.msra.mxu0 %v2513
    %2702 = vmatprep.subr.bf16.mxu0 %v2512
    %2703 = vmatpush1.bf16.msra.mxu0 %v2511
    %2704 = vmatprep.subr.bf16.mxu0 0
    %2705 = vmatpush2.bf16.msra.mxu0 0
    %2706 = vmatprep.subr.bf16.mxu0 0
    %2707 = vmatpush2.bf16.msra.mxu0 0
    %2708 = vmatprep.subr.bf16.mxu0 0
    %2709 = vmatpush2.bf16.msra.mxu0 0
    %2710 = vmatprep.subr.bf16.mxu0 0
    %2711 = vmatpush2.bf16.msra.mxu0 0
    %2712 = vmatprep.subr.bf16.mxu0 0
    %2713 = vmatpush2.bf16.msra.mxu0 0
    %2714 = vmatprep.subr.bf16.mxu0 0
    %2715 = vmatpush2.bf16.msra.mxu0 0
    %2716 = vmatprep.subr.bf16.mxu0 0
    %2717 = vmatpush2.bf16.msra.mxu0 0
    %2718 = vmatprep.subr.bf16.mxu0 0
    %2719 = vmatpush2.bf16.msra.mxu0 0
    %2720 = vmatprep.mubr.bf16.mxu0 0
    %2721 = vmatmul.mubr.bf16.gmra.mxu0 %v2265
    %v2722 = vpop.f32.mrf.mxu0
    %v2723 = vadd.f32 %v2610, %v2722
    %v2724 = vpop.f32.mrf.mxu0
    %v2725 = vadd.f32 %v2612, %v2724
    %v2726 = vpop.f32.mrf.mxu0
    %v2727 = vadd.f32 %v2614, %v2726
    %v2728 = vpop.f32.mrf.mxu0
    %v2729 = vadd.f32 %v2616, %v2728
    %2730 = vmatprep.mubr.bf16.mxu0 0
    %2731 = vmatmul.mubr.bf16.gmra.mxu0 %v2268
    %v2732 = vpop.f32.mrf.mxu0
    %v2733 = vadd.f32 %v2620, %v2732
    %v2734 = vpop.f32.mrf.mxu0
    %v2735 = vadd.f32 %v2622, %v2734
    %v2736 = vpop.f32.mrf.mxu0
    %v2737 = vadd.f32 %v2624, %v2736
    %v2738 = vpop.f32.mrf.mxu0
    %v2739 = vadd.f32 %v2626, %v2738
    %2740 = vmatprep.mubr.bf16.mxu0 0
    %2741 = vmatmul.mubr.bf16.gmra.mxu0 %v2271
    %v2742 = vpop.f32.mrf.mxu0
    %v2743 = vadd.f32 %v2630, %v2742
    %v2744 = vpop.f32.mrf.mxu0
    %v2745 = vadd.f32 %v2632, %v2744
    %v2746 = vpop.f32.mrf.mxu0
    %v2747 = vadd.f32 %v2634, %v2746
    %v2748 = vpop.f32.mrf.mxu0
    %v2749 = vadd.f32 %v2636, %v2748
    %2750 = vmatprep.mubr.bf16.mxu0 0
    %2751 = vmatmul.mubr.bf16.gmra.mxu0 %v2274
    %v2752 = vpop.f32.mrf.mxu0
    %v2753 = vadd.f32 %v2640, %v2752
    %v2754 = vpop.f32.mrf.mxu0
    %v2755 = vadd.f32 %v2642, %v2754
    %v2756 = vpop.f32.mrf.mxu0
    %v2757 = vadd.f32 %v2644, %v2756
    %v2758 = vpop.f32.mrf.mxu0
    %v2759 = vadd.f32 %v2646, %v2758
    %2760 = vmatprep.mubr.bf16.mxu0 0
    %2761 = vmatmul.mubr.bf16.gmra.mxu0 %v2277
    %v2762 = vpop.f32.mrf.mxu0
    %v2763 = vadd.f32 %v2650, %v2762
    %v2764 = vpop.f32.mrf.mxu0
    %v2765 = vadd.f32 %v2652, %v2764
    %v2766 = vpop.f32.mrf.mxu0
    %v2767 = vadd.f32 %v2654, %v2766
    %v2768 = vpop.f32.mrf.mxu0
    %v2769 = vadd.f32 %v2656, %v2768
    %2770 = vmatprep.mubr.bf16.mxu0 0
    %2771 = vmatmul.mubr.bf16.gmra.mxu0 %v2280
    %v2772 = vpop.f32.mrf.mxu0
    %v2773 = vadd.f32 %v2660, %v2772
    %v2774 = vpop.f32.mrf.mxu0
    %v2775 = vadd.f32 %v2662, %v2774
    %v2776 = vpop.f32.mrf.mxu0
    %v2777 = vadd.f32 %v2664, %v2776
    %v2778 = vpop.f32.mrf.mxu0
    %v2779 = vadd.f32 %v2666, %v2778
    %2780 = vmatprep.mubr.bf16.mxu0 0
    %2781 = vmatmul.mubr.bf16.gmra.mxu0 %v2283
    %v2782 = vpop.f32.mrf.mxu0
    %v2783 = vadd.f32 %v2670, %v2782
    %v2784 = vpop.f32.mrf.mxu0
    %v2785 = vadd.f32 %v2672, %v2784
    %v2786 = vpop.f32.mrf.mxu0
    %v2787 = vadd.f32 %v2674, %v2786
    %v2788 = vpop.f32.mrf.mxu0
    %v2789 = vadd.f32 %v2676, %v2788
    %2790 = vmatprep.mubr.bf16.mxu0 0
    %2791 = vmatmul.mubr.bf16.gmra.mxu0 %v2286
    %v2792 = vpop.f32.mrf.mxu0
    %v2793 = vadd.f32 %v2680, %v2792
    %v2794 = vpop.f32.mrf.mxu0
    %v2795 = vadd.f32 %v2682, %v2794
    %v2796 = vpop.f32.mrf.mxu0
    %v2797 = vadd.f32 %v2684, %v2796
    %v2798 = vpop.f32.mrf.mxu0
    %v2799 = vadd.f32 %v2686, %v2798
    %2800 = vdwg.mxu0
    %v2801 = vpack.c.bf16 %v2727, %v2723
    %v2802 = vpack.c.bf16 %v2729, %v2725
    %v2803 = vpack.c.bf16 %v2737, %v2733
    %v2804 = vpack.c.bf16 %v2739, %v2735
    %v2805 = vpack.c.bf16 %v2747, %v2743
    %v2806 = vpack.c.bf16 %v2749, %v2745
    %v2807 = vpack.c.bf16 %v2757, %v2753
    %v2808 = vpack.c.bf16 %v2759, %v2755
    %v2809 = vpack.c.bf16 %v2767, %v2763
    %v2810 = vpack.c.bf16 %v2769, %v2765
    %v2811 = vpack.c.bf16 %v2777, %v2773
    %v2812 = vpack.c.bf16 %v2779, %v2775
    %v2813 = vpack.c.bf16 %v2787, %v2783
    %v2814 = vpack.c.bf16 %v2789, %v2785
    %v2815 = vpack.c.bf16 %v2797, %v2793
    %v2816 = vpack.c.bf16 %v2799, %v2795
    %v2817 = vld [vmem:[%s7] sm:$0x3]
    %v2820 = vunpack.c.l.s4 1966171168
    %v2821 = vunpack.c.0.s8 %v2820
    %v2822 = vlaneseq
    %v2823 = vshrl.u32 %v2822, 7
    %v2824 = vsub.s32 %v2821, %v2823
    %v2825 = vrot.slane %v2817, %v2824
    %v2826 = vcombine.high %v2825, %v2825
    %v2828 = vunpack.c.l.s4 1966171168
    %v2829 = vunpack.c.0.s8 %v2828
    %v2830 = vlaneseq
    %v2831 = vshrl.u32 %v2830, 7
    %v2832 = vsub.s32 %v2829, %v2831
    %v2833 = vrot.slane %v2825, %v2832
    %v2835 = vunpack.c.l.s4 1966171168
    %v2836 = vunpack.c.0.s8 %v2835
    %v2837 = vlaneseq
    %v2838 = vshrl.u32 %v2837, 7
    %v2839 = vsub.s32 %v2836, %v2838
    %v2840 = vrot.slane %v2826, %v2839
    %v2842 = vpack.i.b16 %v2833, %v2833
    %v2844 = vlaneseq
    %v2845 = vshrl.u32 %v2844, 7
    %v2846 = vsub.s32 0, %v2845
    %v2847 = vrot.slane %v2842, %v2846
    %v2849 = vpack.i.b16 %v2840, %v2840
    %v2851 = vlaneseq
    %v2852 = vshrl.u32 %v2851, 7
    %v2853 = vsub.s32 0, %v2852
    %v2854 = vrot.slane %v2849, %v2853
    %v2855 = vadd.bf16 %v2801, %v2847
    %v2856 = vadd.bf16 %v2802, %v2854
    %v2857 = vadd.bf16 %v2803, %v2847
    %v2858 = vadd.bf16 %v2804, %v2854
    %v2859 = vadd.bf16 %v2805, %v2847
    %v2860 = vadd.bf16 %v2806, %v2854
    %v2861 = vadd.bf16 %v2807, %v2847
    %v2862 = vadd.bf16 %v2808, %v2854
    %v2863 = vadd.bf16 %v2809, %v2847
    %v2864 = vadd.bf16 %v2810, %v2854
    %v2865 = vadd.bf16 %v2811, %v2847
    %v2866 = vadd.bf16 %v2812, %v2854
    %v2867 = vadd.bf16 %v2813, %v2847
    %v2868 = vadd.bf16 %v2814, %v2854
    %v2869 = vadd.bf16 %v2815, %v2847
    %v2870 = vadd.bf16 %v2816, %v2854
    %v2871 = vmax.bf16 %v2855, 0
    %v2872 = vmax.bf16 %v2856, 0
    %v2873 = vmax.bf16 %v2857, 0
    %v2874 = vmax.bf16 %v2858, 0
    %v2875 = vmax.bf16 %v2859, 0
    %v2876 = vmax.bf16 %v2860, 0
    %v2877 = vmax.bf16 %v2861, 0
    %v2878 = vmax.bf16 %v2862, 0
    %v2879 = vmax.bf16 %v2863, 0
    %v2880 = vmax.bf16 %v2864, 0
    %v2881 = vmax.bf16 %v2865, 0
    %v2882 = vmax.bf16 %v2866, 0
    %v2883 = vmax.bf16 %v2867, 0
    %v2884 = vmax.bf16 %v2868, 0
    %v2885 = vmax.bf16 %v2869, 0
    %v2886 = vmax.bf16 %v2870, 0
    %v2887 = vld [vmem:[%s8] sm:$0x3]
    %v2888 = vld [vmem:[#allocation2] sm:$0x1]
    %2890 = vset.pattern.permute.xlu0 0
    %2891 = vperm.xlu0 %2890, %v2888
    %v2892 = vpop.permute.xlu0 %2891
    %v2894 = vlaneseq
    %v2895 = vshrl.u32 %v2894, 7
    %v2896 = vsub.s32 0, %v2895
    %v2897 = vrot.slane %v2892, %v2896
    %v2900 = vunpack.c.l.s4 1966171168
    %v2901 = vunpack.c.0.s8 %v2900
    %v2902 = vlaneseq
    %v2903 = vshrl.u32 %v2902, 7
    %v2904 = vsub.s32 %v2901, %v2903
    %v2905 = vrot.slane %v2887, %v2904
    %v2906 = vcombine.high %v2905, %v2905
    %v2908 = vunpack.c.l.s4 1966171168
    %v2909 = vunpack.c.0.s8 %v2908
    %v2910 = vlaneseq
    %v2911 = vshrl.u32 %v2910, 7
    %v2912 = vsub.s32 %v2909, %v2911
    %v2913 = vrot.slane %v2905, %v2912
    %v2915 = vunpack.c.l.s4 1966171168
    %v2916 = vunpack.c.0.s8 %v2915
    %v2917 = vlaneseq
    %v2918 = vshrl.u32 %v2917, 7
    %v2919 = vsub.s32 %v2916, %v2918
    %v2920 = vrot.slane %v2906, %v2919
    %2923 = vmatprep.subr.bf16.mxu0 %v2886
    %2924 = vmatpush1.bf16.xpose.msra.mxu0 %v2885
    %2925 = vmatprep.subr.bf16.mxu0 %v2884
    %2926 = vmatpush1.bf16.xpose.msra.mxu0 %v2883
    %2927 = vmatprep.subr.bf16.mxu0 %v2882
    %2928 = vmatpush1.bf16.xpose.msra.mxu0 %v2881
    %2929 = vmatprep.subr.bf16.mxu0 %v2880
    %2930 = vmatpush1.bf16.xpose.msra.mxu0 %v2879
    %2931 = vmatprep.subr.bf16.mxu0 %v2878
    %2932 = vmatpush1.bf16.xpose.msra.mxu0 %v2877
    %2933 = vmatprep.subr.bf16.mxu0 %v2876
    %2934 = vmatpush1.bf16.xpose.msra.mxu0 %v2875
    %2935 = vmatprep.subr.bf16.mxu0 %v2874
    %2936 = vmatpush1.bf16.xpose.msra.mxu0 %v2873
    %2937 = vmatprep.subr.bf16.mxu0 %v2872
    %2938 = vmatpush1.bf16.xpose.msra.mxu0 %v2871
    %2939 = vmatprep.subr.bf16.mxu0 0
    %2940 = vmatpush2.bf16.xpose.msra.mxu0 0
    %2941 = vmatprep.subr.bf16.mxu0 0
    %2942 = vmatpush2.bf16.xpose.msra.mxu0 0
    %2943 = vmatprep.subr.bf16.mxu0 0
    %2944 = vmatpush2.bf16.xpose.msra.mxu0 0
    %2945 = vmatprep.subr.bf16.mxu0 0
    %2946 = vmatpush2.bf16.xpose.msra.mxu0 0
    %2947 = vmatprep.subr.bf16.mxu0 0
    %2948 = vmatpush2.bf16.xpose.msra.mxu0 0
    %2949 = vmatprep.subr.bf16.mxu0 0
    %2950 = vmatpush2.bf16.xpose.msra.mxu0 0
    %2951 = vmatprep.subr.bf16.mxu0 0
    %2952 = vmatpush2.bf16.xpose.msra.mxu0 0
    %2953 = vmatprep.subr.bf16.mxu0 0
    %2954 = vmatpush2.bf16.xpose.msra.mxu0 0
    %2955 = vmatprep.mubr.bf16.mxu0 %v2920
    %2956 = vmatmul.mubr.bf16.gmra.mxu0 %v2913
    %v2957 = vpop.f32.mrf.mxu0
    %v2958 = vadd.f32 %v2897, %v2957
    %v2959 = vpop.f32.mrf.mxu0
    %v2960 = vpop.f32.mrf.mxu0
    %v2961 = vpop.f32.mrf.mxu0
    %2962 = vdwg.mxu0
    %2963 = vst [vmem:[#allocation12] sm:$0x1] %v2958
    // Predicated region
    $region62: #{tpu_custom_call.1} parent=1 // pred_check
      _
    $region63: #{tpu_custom_call.1} parent=1 // pred_check_branch
      %2965 = sbr.rel (0) target = $region65
    $region64: #{tpu_custom_call.1} parent=1 // pred_region
      %s2967 = ssub.s32 16, 16
      %2968 = vsyncadd [#allocation5], %s2967
      %s2970 = sshll.u32 [#allocation12], 4
      %s2971 = int_to_ptr.vmem [resolvable:$true] %s2970
      %2973 = dma.vmem_to_hbm [thread:$0]  %s2971, 16, %s10, [#allocation5]
    $region65: #{tpu_custom_call.1} parent=1 // pred_fallthru
      _
    // Predicated region
    $region66: #{tpu_custom_call.1} parent=1 // pred_check
      _
    $region67: #{tpu_custom_call.1} parent=1 // pred_check_branch
      %2975 = sbr.rel (0) target = $region69
    $region68: #{tpu_custom_call.1} parent=1 // pred_region
      %2976 = dma.done [#allocation5], 16
    $region69: #{tpu_custom_call.1} parent=1 // pred_fallthru
      _
    %2977 = vsyncpa [#allocation4], 1
    %2978 = vsyncpa [#allocation7], 1
    %2979 = vsyncpa [#allocation10], 1
    %2980 = vsyncpa [#allocation5], 1

</llo_original>
